<compile_context>
chip_gen: v6e
topology: v6e:2x2x1
jax: 0.10.0
libtpu: 0.0.40
codegen_flags: <defaults>
</compile_context>

<pallas_src>
import functools

import jax
import jax.numpy as jnp
from jax.experimental import pallas as pl
from jax.experimental.pallas import tpu as pltpu

_EPS = 1e-5           # nn.InstanceNorm2d default eps
_NEG_SLOPE = 0.01     # F.leaky_relu default negative_slope


def _leaky_relu(h):
    return jnp.where(h >= 0, h, _NEG_SLOPE * h)


def _finalize_stats(sum_sc, ssq_sc, inv_hw):
    # Single-sweep statistics: E[x^2] - E[x]^2 in f32, rsqrt on the EUP.
    mean = sum_sc[...] * inv_hw
    var = jnp.maximum(ssq_sc[...] * inv_hw - mean * mean, 0.0)
    rstd = jax.lax.rsqrt(var + _EPS)
    return mean, rstd


# ---- pass 1: h1 = conv1(x) materialized + per-channel InstanceNorm stats ----
def _pass1_kernel(x_ref, w1_ref, h1_ref, mean1_ref, rstd1_ref, sum_sc, ssq_sc,
                  *, inv_hw, compute_dtype):
    t = pl.program_id(1)

    @pl.when(t == 0)
    def _init():
        sum_sc[...] = jnp.zeros_like(sum_sc)
        ssq_sc[...] = jnp.zeros_like(ssq_sc)

    # [256, Cin] @ [Cin, THW] -> [256, THW]; f32 accumulation on the MXU.
    # x tile is cast to the compute dtype here (no wrapper-side astype pass).
    h1 = jnp.dot(w1_ref[...], x_ref[0].astype(compute_dtype),
                 preferred_element_type=jnp.float32)
    sum_sc[...] += jnp.sum(h1, axis=-1, keepdims=True)
    ssq_sc[...] += jnp.sum(h1 * h1, axis=-1, keepdims=True)
    h1_ref[0] = h1.astype(h1_ref.dtype)

    @pl.when(t == pl.num_programs(1) - 1)
    def _fin():
        mean, rstd = _finalize_stats(sum_sc, ssq_sc, inv_hw)
        mean1_ref[0] = mean
        rstd1_ref[0] = rstd


# ---- pass 2: h2 = conv2(lrelu(IN1(h1))) materialized + its stats ------------
def _pass2_kernel(h1_ref, w2_ref, mean1_ref, rstd1_ref,
                  h2_ref, mean2_ref, rstd2_ref, sum_sc, ssq_sc,
                  *, inv_hw, hw, thw, needs_mask, compute_dtype):
    t = pl.program_id(1)

    @pl.when(t == 0)
    def _init():
        sum_sc[...] = jnp.zeros_like(sum_sc)
        ssq_sc[...] = jnp.zeros_like(ssq_sc)

    g1 = _leaky_relu((h1_ref[0].astype(jnp.float32) - mean1_ref[0])
                     * rstd1_ref[0])                              # f32 norm
    h2 = jnp.dot(w2_ref[...], g1.astype(compute_dtype),
                 preferred_element_type=jnp.float32)              # [128, THW]
    if needs_mask:
        # Zero the padded tail lanes so they neither bias the statistics nor
        # leak into the materialized h2 (one VPU select per tile).
        lane = jax.lax.broadcasted_iota(jnp.int32, h2.shape, 1)
        h2 = jnp.where(t * thw + lane < hw, h2, 0.0)
    sum_sc[...] += jnp.sum(h2, axis=-1, keepdims=True)
    ssq_sc[...] += jnp.sum(h2 * h2, axis=-1, keepdims=True)
    h2_ref[0] = h2.astype(h2_ref.dtype)

    @pl.when(t == pl.num_programs(1) - 1)
    def _fin():
        mean, rstd = _finalize_stats(sum_sc, ssq_sc, inv_hw)
        mean2_ref[0] = mean
        rstd2_ref[0] = rstd


# ---- pass 3: sigmoid(conv3(lrelu(IN2(h2)))); lane-dense output --------------
def _pass3_kernel(h2_ref, w3_ref, mean2_ref, rstd2_ref, o_ref, *, compute_dtype):
    g2 = _leaky_relu((h2_ref[0].astype(jnp.float32) - mean2_ref[0])
                     * rstd2_ref[0])
    # channel-major conv3: [1,128] @ [128,THW] -> [1,THW] (lane-dense result)
    h3 = jnp.dot(w3_ref[...], g2.astype(compute_dtype),
                 preferred_element_type=jnp.float32)
    o_ref[0] = jax.nn.sigmoid(h3).astype(o_ref.dtype)


# ---------------------------- tiling heuristics ------------------------------
def _bytes_per_lane(c, itemsize):
    """Rough worst-pass VMEM bytes per HW lane (double-buffered I/O + temps)."""
    p1 = 2 * 4 * c + 2 * itemsize * 256 + 2 * 4 * 256        # x + h1-out + temps
    p2 = 2 * itemsize * 256 + 2 * itemsize * 128 + 4 * 256 + 2 * 4 * 128
    return max(p1, p2)


def _pick_hw_tile(hw, c, itemsize, max_hw_tile, vmem_budget_bytes):
    """Lane tile: multiple of 128, capped so the per-step footprint fits."""
    hw128 = -(-hw // 128) * 128
    cap = (vmem_budget_bytes // _bytes_per_lane(c, itemsize)) // 128 * 128
    cap = max(cap, 128)
    if max_hw_tile is not None:
        cap = min(cap, max(128, (max_hw_tile // 128) * 128))
    return int(min(hw128, cap))


def _mosaic_params(semantics, per_step_bytes):
    # Only raise the scoped-VMEM limit when the footprint needs it; the 48 MiB
    # cap is safe on v7x (64 MiB physical) as well as v5e/v6e (128 MiB).
    limit = int(per_step_bytes) + (8 << 20)
    if limit <= (16 << 20):
        return pltpu.CompilerParams(dimension_semantics=semantics)
    return pltpu.CompilerParams(dimension_semantics=semantics,
                                vmem_limit_bytes=min(limit, 48 << 20))


# --------------------------------- wrapper -----------------------------------
def discriminator_forward(x_nchw, w1, w2, w3, *,
                          compute_dtype=jnp.bfloat16,
                          max_hw_tile=None,
                          vmem_budget_bytes=32 << 20):
    """x_nchw: [N, C, H, W] float32.  Returns [N, 1, H, W] float32.

    Weights follow the PyTorch conv1x1 (bias=False) convention:
    w1 [256, C], w2 [128, 256], w3 [1, 128]."""
    N, C, H, W = x_nchw.shape
    HW = H * W
    itemsize = jnp.dtype(compute_dtype).itemsize
    thw = _pick_hw_tile(HW, C, itemsize, max_hw_tile, vmem_budget_bytes)
    n_t = -(-HW // thw)
    hw_pad = n_t * thw
    inv_hw = 1.0 / float(HW)        # true HW: zero padding drops out of stats

    # Channel-major [N, C, HW]: free view of NCHW.  x stays f32 (read once);
    # zero-pad the HW axis only when it is not a multiple of the lane tile.
    x = x_nchw.reshape(N, C, HW)
    if hw_pad != HW:
        x = jnp.pad(x, ((0, 0), (0, 0), (0, hw_pad - HW)))
    w1c = w1.astype(compute_dtype)
    w2c = w2.astype(compute_dtype)
    w3c = w3.astype(compute_dtype)

    x_spec = pl.BlockSpec((1, C, thw), lambda n, t: (n, 0, t))
    h1_spec = pl.BlockSpec((1, 256, thw), lambda n, t: (n, 0, t))
    h2_spec = pl.BlockSpec((1, 128, thw), lambda n, t: (n, 0, t))
    # Pass 3 is DMA-bound after the restructure: deepen its input pipeline.
    h2_spec_deep = pl.BlockSpec((1, 128, thw), lambda n, t: (n, 0, t),
                                pipeline_mode=pl.Buffered(3))
    w1_spec = pl.BlockSpec((256, C), lambda n, t: (0, 0))
    w2_spec = pl.BlockSpec((128, 256), lambda n, t: (0, 0))
    w3_spec = pl.BlockSpec((1, 128), lambda n, t: (0, 0))
    s256_spec = pl.BlockSpec((1, 256, 1), lambda n, t: (n, 0, 0))
    s128_spec = pl.BlockSpec((1, 128, 1), lambda n, t: (n, 0, 0))

    stat256 = jax.ShapeDtypeStruct((N, 256, 1), jnp.float32)
    stat128 = jax.ShapeDtypeStruct((N, 128, 1), jnp.float32)
    h1_shape = jax.ShapeDtypeStruct((N, 256, hw_pad), compute_dtype)
    h2_shape = jax.ShapeDtypeStruct((N, 128, hw_pad), compute_dtype)

    per_step = (_bytes_per_lane(C, itemsize) * thw
                + itemsize * (256 * C + 128 * 256 + 128))
    reduce_params = _mosaic_params(("parallel", "arbitrary"), per_step)
    final_params = _mosaic_params(("parallel", "parallel"), per_step)

    # ---- pass 1: h1 + InstanceNorm statistics of conv1(x) ----
    h1, mean1, rstd1 = pl.pallas_call(
        functools.partial(_pass1_kernel, inv_hw=inv_hw,
                          compute_dtype=compute_dtype),
        out_shape=(h1_shape, stat256, stat256),
        grid_spec=pltpu.PrefetchScalarGridSpec(
            num_scalar_prefetch=0,
            grid=(N, n_t),
            in_specs=[x_spec, w1_spec],
            out_specs=[h1_spec, s256_spec, s256_spec],
            scratch_shapes=[pltpu.VMEM((256, 1), jnp.float32),
                            pltpu.VMEM((256, 1), jnp.float32)],
        ),
        compiler_params=reduce_params,
    )(x, w1c)

    # ---- pass 2: h2 + InstanceNorm statistics of conv2(lrelu(IN1(h1))) ----
    h2, mean2, rstd2 = pl.pallas_call(
        functools.partial(_pass2_kernel, inv_hw=inv_hw, hw=HW, thw=thw,
                          needs_mask=(hw_pad != HW),
                          compute_dtype=compute_dtype),
        out_shape=(h2_shape, stat128, stat128),
        grid_spec=pltpu.PrefetchScalarGridSpec(
            num_scalar_prefetch=0,
            grid=(N, n_t),
            in_specs=[h1_spec, w2_spec, s256_spec, s256_spec],
            out_specs=[h2_spec, s128_spec, s128_spec],
            scratch_shapes=[pltpu.VMEM((128, 1), jnp.float32),
                            pltpu.VMEM((128, 1), jnp.float32)],
        ),
        compiler_params=reduce_params,
    )(h1, w2c, mean1, rstd1)

    # ---- pass 3: fused finalize; both grid axes fully parallel ----
    out = pl.pallas_call(
        functools.partial(_pass3_kernel, compute_dtype=compute_dtype),
        out_shape=jax.ShapeDtypeStruct((N, 1, hw_pad), jnp.float32),
        grid_spec=pltpu.PrefetchScalarGridSpec(
            num_scalar_prefetch=0,
            grid=(N, n_t),
            in_specs=[h2_spec_deep, w3_spec, s128_spec, s128_spec],
            out_specs=pl.BlockSpec((1, 1, thw), lambda n, t: (n, 0, t)),
        ),
        compiler_params=final_params,
    )(h2, w3c, mean2, rstd2)

    if hw_pad != HW:
        out = out[:, :, :HW]
    # [N, 1, HW] is already NCHW for a single output channel — free reshape.
    return out.reshape(N, 1, H, W)


def init_params(key, dim):
    """Deterministic synthetic weights matching the module's conv shapes."""
    k1, k2, k3 = jax.random.split(key, 3)
    # nn.Conv2d(kernel_size=1, bias=False) weight [out, in, 1, 1] -> [out, in]
    w1 = jax.random.normal(k1, (256, dim), jnp.float32) * (1.0 / jnp.sqrt(dim))
    w2 = jax.random.normal(k2, (128, 256), jnp.float32) * (1.0 / jnp.sqrt(256.0))
    w3 = jax.random.normal(k3, (1, 128), jnp.float32) * (1.0 / jnp.sqrt(128.0))
    return w1, w2, w3


def _reference_forward(x_nchw, w1, w2, w3):
    """Pure-JAX f32 reference (NCHW) matching the PyTorch module."""
    def conv1x1_(x, w):
        return jnp.einsum("nchw,oc->nohw", x, w)

    def inorm(x):
        mean = jnp.mean(x, axis=(2, 3), keepdims=True)
        var = jnp.mean((x - mean) ** 2, axis=(2, 3), keepdims=True)
        return (x - mean) / jnp.sqrt(var + _EPS)

    def lrelu(x):
        return jnp.where(x >= 0, x, _NEG_SLOPE * x)

    h = lrelu(inorm(conv1x1_(x_nchw, w1)))
    h = lrelu(inorm(conv1x1_(h, w2)))
    return jax.nn.sigmoid(conv1x1_(h, w3))


if __name__ == "__main__":
    key = jax.random.PRNGKey(0)
    kx, kx2, kp = jax.random.split(key, 3)

    N, dim, H, W = 2, 4, 16, 16
    x = jax.random.normal(kx, (N, dim, H, W), jnp.float32)
    w1, w2, w3 = init_params(kp, dim)

    y_ref = _reference_forward(x, w1, w2, w3)

    # f32 compute path, forced multi-tile HW (exercises the cross-tile
    # InstanceNorm reduction and the materialized h1/h2 hand-off): tight check.
    y_f32 = discriminator_forward(x, w1, w2, w3,
                                  compute_dtype=jnp.float32, max_hw_tile=128)
    jax.block_until_ready(y_f32)
    assert y_f32.shape == (N, 1, H, W)
    assert jnp.allclose(y_f32, y_ref, atol=1e-4, rtol=1e-4)

    # Default bf16-MXU path (single HW tile at this size): loose check.
    y_bf16 = discriminator_forward(x, w1, w2, w3)
    jax.block_until_ready(y_bf16)
    assert y_bf16.shape == (N, 1, H, W)
    assert jnp.allclose(y_bf16, y_ref, atol=5e-2, rtol=5e-2)

    # Non-128-multiple spatial size: exercises the zero-pad + masked-tail path.
    H2, W2 = 10, 13                               # HW = 130 -> padded to 256
    x2 = jax.random.normal(kx2, (N, dim, H2, W2), jnp.float32)
    y2_ref = _reference_forward(x2, w1, w2, w3)
    y2 = discriminator_forward(x2, w1, w2, w3,
                               compute_dtype=jnp.float32, max_hw_tile=128)
    jax.block_until_ready(y2)
    assert y2.shape == (N, 1, H2, W2)
    assert jnp.allclose(y2, y2_ref, atol=1e-4, rtol=1e-4)

    print("KERNEL_OK")
</pallas_src>

<mosaic_0001>
module attributes {stable_mosaic.version = 11 : i64} {
  func.func @_pass1_kernel(%arg0: i32, %arg1: i32, %arg2: memref<1x4x128xf32, #tpu.memory_space<vmem>>, %arg3: memref<256x4xf32, #tpu.memory_space<vmem>>, %arg4: memref<1x256x128xf32, #tpu.memory_space<vmem>>, %arg5: memref<1x256x1xf32, #tpu.memory_space<vmem>>, %arg6: memref<1x256x1xf32, #tpu.memory_space<vmem>>, %arg7: memref<256x1xf32, #tpu.memory_space<vmem>>, %arg8: memref<256x1xf32, #tpu.memory_space<vmem>>) attributes {dimension_semantics = [#tpu.dimension_semantics<parallel>, #tpu.dimension_semantics<arbitrary>], iteration_bounds = array<i64: 2, 2>, scalar_prefetch = 0 : i64, scratch_operands = 2 : i64, tpu.core_type = #tpu.core_type<tc>, window_params = [{transform_indices = @transform_0, window_bounds = array<i64: 1, 4, 128>}, {pipeline_mode = #tpu.pipeline_mode<synchronous>, transform_indices = @transform_1, window_bounds = array<i64: 256, 4>}, {transform_indices = @transform_2, window_bounds = array<i64: 1, 256, 128>}, {transform_indices = @transform_3, window_bounds = array<i64: 1, 256, 1>}, {transform_indices = @transform_4, window_bounds = array<i64: 1, 256, 1>}]} {
    %c0_i32 = arith.constant 0 : i32
    %0 = arith.cmpi eq, %arg1, %c0_i32 : i32
    %1 = arith.extui %0 : i1 to i32
    %c0_i32_0 = arith.constant 0 : i32
    %2 = arith.cmpi ne, %1, %c0_i32_0 : i32
    scf.if %2 {
      %cst_19 = arith.constant 0.000000e+00 : f32
      %24 = vector.broadcast %cst_19 : f32 to vector<256x1xf32>
      %c0_20 = arith.constant 0 : index
      %c0_21 = arith.constant 0 : index
      %25 = vector.load %arg7[%c0_20, %c0_21] : memref<256x1xf32, #tpu.memory_space<vmem>>, vector<256x1xf32>
      tpu.vector_store %arg7[%c0_20, %c0_21], %24 {strides = array<i32>} : memref<256x1xf32, #tpu.memory_space<vmem>>, vector<256x1xf32>,
      %cst_22 = arith.constant 0.000000e+00 : f32
      %26 = vector.broadcast %cst_22 : f32 to vector<256x1xf32>
      %c0_23 = arith.constant 0 : index
      %c0_24 = arith.constant 0 : index
      %27 = vector.load %arg8[%c0_23, %c0_24] : memref<256x1xf32, #tpu.memory_space<vmem>>, vector<256x1xf32>
      tpu.vector_store %arg8[%c0_23, %c0_24], %26 {strides = array<i32>} : memref<256x1xf32, #tpu.memory_space<vmem>>, vector<256x1xf32>,
    } else {
    }
    %c0 = arith.constant 0 : index
    %c0_1 = arith.constant 0 : index
    %3 = vector.load %arg3[%c0, %c0_1] : memref<256x4xf32, #tpu.memory_space<vmem>>, vector<256x4xf32>
    %c0_2 = arith.constant 0 : index
    %c0_3 = arith.constant 0 : index
    %c0_4 = arith.constant 0 : index
    %4 = vector.load %arg2[%c0_2, %c0_3, %c0_4] : memref<1x4x128xf32, #tpu.memory_space<vmem>>, vector<1x4x128xf32>
    %5 = vector.shape_cast %4 : vector<1x4x128xf32> to vector<4x128xf32>
    %cst = arith.constant dense<0.000000e+00> : vector<256x128xf32>
    %6 = tpu.matmul %3, %5, %cst {dimension_numbers = #tpu.dot_dimension_numbers<[1], [0], [0], [1], [0, 0, 1, 1], [], []>} : vector<256x4xf32>, vector<4x128xf32>, vector<256x128xf32> -> vector<256x128xf32>
    %c0_5 = arith.constant 0 : index
    %c0_6 = arith.constant 0 : index
    %7 = vector.load %arg7[%c0_5, %c0_6] : memref<256x1xf32, #tpu.memory_space<vmem>>, vector<256x1xf32>
    %cst_7 = arith.constant dense<0.000000e+00> : vector<256xf32>
    %8 = vector.multi_reduction <add>, %6, %cst_7 [1] : vector<256x128xf32> to vector<256xf32>
    %9 = vector.shape_cast %8 : vector<256xf32> to vector<256x1xf32>
    %10 = arith.addf %7, %9 : vector<256x1xf32>
    %c0_8 = arith.constant 0 : index
    %c0_9 = arith.constant 0 : index
    %11 = vector.load %arg7[%c0_8, %c0_9] : memref<256x1xf32, #tpu.memory_space<vmem>>, vector<256x1xf32>
    tpu.vector_store %arg7[%c0_8, %c0_9], %10 {strides = array<i32>} : memref<256x1xf32, #tpu.memory_space<vmem>>, vector<256x1xf32>,
    %c0_10 = arith.constant 0 : index
    %c0_11 = arith.constant 0 : index
    %12 = vector.load %arg8[%c0_10, %c0_11] : memref<256x1xf32, #tpu.memory_space<vmem>>, vector<256x1xf32>
    %13 = arith.mulf %6, %6 : vector<256x128xf32>
    %cst_12 = arith.constant dense<0.000000e+00> : vector<256xf32>
    %14 = vector.multi_reduction <add>, %13, %cst_12 [1] : vector<256x128xf32> to vector<256xf32>
    %15 = vector.shape_cast %14 : vector<256xf32> to vector<256x1xf32>
    %16 = arith.addf %12, %15 : vector<256x1xf32>
    %c0_13 = arith.constant 0 : index
    %c0_14 = arith.constant 0 : index
    %17 = vector.load %arg8[%c0_13, %c0_14] : memref<256x1xf32, #tpu.memory_space<vmem>>, vector<256x1xf32>
    tpu.vector_store %arg8[%c0_13, %c0_14], %16 {strides = array<i32>} : memref<256x1xf32, #tpu.memory_space<vmem>>, vector<256x1xf32>,
    %c0_15 = arith.constant 0 : index
    %c0_16 = arith.constant 0 : index
    %c0_17 = arith.constant 0 : index
    %18 = vector.load %arg4[%c0_15, %c0_16, %c0_17] : memref<1x256x128xf32, #tpu.memory_space<vmem>>, vector<1x256x128xf32>
    %19 = vector.shape_cast %18 : vector<1x256x128xf32> to vector<256x128xf32>
    %20 = vector.shape_cast %6 : vector<256x128xf32> to vector<1x256x128xf32>
    tpu.vector_store %arg4[%c0_15, %c0_16, %c0_17], %20 {strides = array<i32>} : memref<1x256x128xf32, #tpu.memory_space<vmem>>, vector<1x256x128xf32>,
    %c1_i32 = arith.constant 1 : i32
    %21 = arith.cmpi eq, %arg1, %c1_i32 : i32
    %22 = arith.extui %21 : i1 to i32
    %c0_i32_18 = arith.constant 0 : i32
    %23 = arith.cmpi ne, %22, %c0_i32_18 : i32
    scf.if %23 {
      %c0_19 = arith.constant 0 : index
      %c0_20 = arith.constant 0 : index
      %24 = vector.load %arg7[%c0_19, %c0_20] : memref<256x1xf32, #tpu.memory_space<vmem>>, vector<256x1xf32>
      %cst_21 = arith.constant 3.906250e-03 : f32
      %25 = vector.broadcast %cst_21 : f32 to vector<256x1xf32>
      %26 = arith.mulf %24, %25 : vector<256x1xf32>
      %c0_22 = arith.constant 0 : index
      %c0_23 = arith.constant 0 : index
      %27 = vector.load %arg8[%c0_22, %c0_23] : memref<256x1xf32, #tpu.memory_space<vmem>>, vector<256x1xf32>
      %cst_24 = arith.constant 3.906250e-03 : f32
      %28 = vector.broadcast %cst_24 : f32 to vector<256x1xf32>
      %29 = arith.mulf %27, %28 : vector<256x1xf32>
      %30 = arith.mulf %26, %26 : vector<256x1xf32>
      %31 = arith.subf %29, %30 : vector<256x1xf32>
      %cst_25 = arith.constant 0.000000e+00 : f32
      %32 = vector.broadcast %cst_25 : f32 to vector<256x1xf32>
      %33 = arith.maximumf %31, %32 : vector<256x1xf32>
      %cst_26 = arith.constant 9.99999974E-6 : f32
      %34 = vector.broadcast %cst_26 : f32 to vector<256x1xf32>
      %35 = arith.addf %33, %34 : vector<256x1xf32>
      %36 = math.rsqrt %35 : vector<256x1xf32>
      %c0_27 = arith.constant 0 : index
      %c0_28 = arith.constant 0 : index
      %c0_29 = arith.constant 0 : index
      %37 = vector.load %arg5[%c0_27, %c0_28, %c0_29] : memref<1x256x1xf32, #tpu.memory_space<vmem>>, vector<1x256x1xf32>
      %38 = vector.shape_cast %37 : vector<1x256x1xf32> to vector<256x1xf32>
      %39 = vector.shape_cast %26 : vector<256x1xf32> to vector<1x256x1xf32>
      tpu.vector_store %arg5[%c0_27, %c0_28, %c0_29], %39 {strides = array<i32>} : memref<1x256x1xf32, #tpu.memory_space<vmem>>, vector<1x256x1xf32>,
      %c0_30 = arith.constant 0 : index
      %c0_31 = arith.constant 0 : index
      %c0_32 = arith.constant 0 : index
      %40 = vector.load %arg6[%c0_30, %c0_31, %c0_32] : memref<1x256x1xf32, #tpu.memory_space<vmem>>, vector<1x256x1xf32>
      %41 = vector.shape_cast %40 : vector<1x256x1xf32> to vector<256x1xf32>
      %42 = vector.shape_cast %36 : vector<256x1xf32> to vector<1x256x1xf32>
      tpu.vector_store %arg6[%c0_30, %c0_31, %c0_32], %42 {strides = array<i32>} : memref<1x256x1xf32, #tpu.memory_space<vmem>>, vector<1x256x1xf32>,
    } else {
    }
    return
  }
  func.func @transform_0(%arg0: i32, %arg1: i32) -> (i32, i32, i32) {
    %c0_i32 = arith.constant 0 : i32
    %c0_i32_0 = arith.constant 0 : i32
    return %arg0, %c0_i32, %arg1 : i32, i32, i32
  }
  func.func @transform_1(%arg0: i32, %arg1: i32) -> (i32, i32) {
    %c0_i32 = arith.constant 0 : i32
    %c0_i32_0 = arith.constant 0 : i32
    %c0_i32_1 = arith.constant 0 : i32
    return %c0_i32, %c0_i32_0 : i32, i32
  }
  func.func @transform_2(%arg0: i32, %arg1: i32) -> (i32, i32, i32) {
    %c0_i32 = arith.constant 0 : i32
    %c0_i32_0 = arith.constant 0 : i32
    return %arg0, %c0_i32, %arg1 : i32, i32, i32
  }
  func.func @transform_3(%arg0: i32, %arg1: i32) -> (i32, i32, i32) {
    %c0_i32 = arith.constant 0 : i32
    %c0_i32_0 = arith.constant 0 : i32
    %c0_i32_1 = arith.constant 0 : i32
    return %arg0, %c0_i32, %c0_i32_0 : i32, i32, i32
  }
  func.func @transform_4(%arg0: i32, %arg1: i32) -> (i32, i32, i32) {
    %c0_i32 = arith.constant 0 : i32
    %c0_i32_0 = arith.constant 0 : i32
    %c0_i32_1 = arith.constant 0 : i32
    return %arg0, %c0_i32, %c0_i32_0 : i32, i32, i32
  }
}

</mosaic_0001>

<llo_original>
// kernel: tpu_custom_call.1
$region0: #{tpu_custom_call.1}
  #allocation0 [shape = 'u32[]', space=smem, size = 0x4, offset = 0x4, fixed_abs, tag = 'smem constant byte address 0x4 - core index']
  #allocation1 [shape = 'u32[144,128]{1,0:T(1,128)}', space=vmem, size = 0x12000, scoped, tag = 'internal scratch']
  #allocation2 [shape = 'f32[256,1]{1,0:T(8,128)}', space=vmem, size = 0x20000, scoped, tag = 'scratch operand']
  #allocation3 [shape = 'f32[256,1]{1,0:T(8,128)}', space=vmem, size = 0x20000, scoped, tag = 'scratch operand']
  %s0 = inlined_call_operand.vmem [shape: f32[2,4,256], index: 0, kind: input, shape index: {}]
  %s1 = inlined_call_operand.vmem [shape: f32[256,4], index: 1, kind: input, shape index: {}]
  %s2 = inlined_call_operand.hbm [shape: f32[2,256,256], index: 2, kind: output, shape index: {0}]
  %s3 = inlined_call_operand.vmem [shape: f32[2,256,1], index: 3, kind: output, shape index: {1}]
  %s4 = inlined_call_operand.vmem [shape: f32[2,256,1], index: 4, kind: output, shape index: {2}]
  %5 = xla_tuple %s2, %s3, %s4
  %s6 = sld [smem:[#allocation0]]
  $region65: #{tpu_custom_call.1} parent=0
    _
  %s8 = ssub.s32 1, %s6
  %s9 = scalar_select 0, %s8, %s6
  $region1: #{tpu_custom_call.1} parent=0
    #allocation4 [shape = 'u8[262144]{0}', space=vmem, size = 0x40000, scoped, tag = 'output window, operand 0']
    #allocation5 [shape = 's32[2]{0}', space=sflag, size = 0x8, scoped, tag = 'scoped memory for tpu_custom_call.1']
    %10 = vsyncpa [#allocation5], 0
    %s11 = scalar_lea.sflag [#allocation5], 1
    %12 = vsyncpa %s11, 0
    loop: start=0, step=1, limit=6
    $region2: #{tpu_custom_call.1} parent=1 // loop_pre_header
      _
    $region3: #{tpu_custom_call.1} parent=1 // loop_header
      %s14 = sphi 0, %s18
      %p15 = scmp.ge.s32.totalorder %s14, 6
      %s21 = sphi 0, %s33
      %s22 = sphi 0, %s29
      %s23 = sphi 0, %s21
      %s24 = sphi 0, %s22
      %s25 = sphi 0, %s23
      %s26 = sphi 0, %s24
      %s38 = sphi 0, %s40
      %s41 = sphi 0, %s38
      %s42 = sphi 0, %s41
      %s58 = sphi 0, %s42
      %s62 = sphi 0, %s62
      %s64 = sphi 0, %s62
      %s65 = sphi 0, %s64
      %s79 = sphi 0, %s65
      %s87 = sphi 0, %s89
      %s90 = sphi 0, %s87
      %s91 = sphi 0, %s90
      %s107 = sphi 0, %s91
      %s113 = sphi 0, %s115
      %s116 = sphi 0, %s113
      %s117 = sphi 0, %s116
      %s133 = sphi 0, %s117
      %s139 = sphi 0, %s141
      %s142 = sphi 0, %s139
      %s143 = sphi 0, %s142
      %s159 = sphi 0, %s143
    $region4: #{tpu_custom_call.1} parent=1 // loop_header_branch
      %17 = sbr.rel (%p15) target = $region8
    $region5: #{tpu_custom_call.1} parent=1 // loop_body
      %s19 = ssub.s32 %s14, 1
      %s20 = ssub.s32 %s14, 2
      %s27 = sadd.s32 1, %s22
      %p28 = scmp.ge.s32.totalorder %s27, 2
      %s29 = scalar_select %p28, 0, %s27
      %s30 = sadd.s32 1, %s21
      %s31 = scalar_select %p28, %s30, %s21
      %p32 = scmp.ge.s32.totalorder %s31, 2
      %s33 = scalar_select %p32, 0, %s31
      %s34 = ssub.s32 %s21, %s33
      %s35 = ssub.s32 %s22, %s29
      %s36 = sor.u32 %s34, %s35
      %p37 = scmp.eq.s32.totalorder %s36, 0
      %s39 = sadd.s32 %s38, 1
      %s40 = scalar_select %p37, %s38, %s39
      %p43 = pneg %p37
      %p44 = scmp.eq.s32.totalorder %s14, 3
      %p45 = por %p43, %p44
      %p46 = scmp.ne.s32.totalorder %s38, %s41
      %p47 = scmp.eq.s32.totalorder %s14, 0
      %p48 = por %p46, %p47
      %p49 = scmp.ne.s32.totalorder %s38, %s41
      %p50 = scmp.eq.s32.totalorder %s19, 3
      %p51 = por %p49, %p50
      %p52 = scmp.ne.s32.totalorder %s41, %s42
      %p53 = scmp.eq.s32.totalorder %s19, 0
      %p54 = por %p52, %p53
      %p55 = scmp.ne.s32.totalorder %s41, %s42
      %p56 = scmp.eq.s32.totalorder %s20, 3
      %p57 = por %p55, %p56
      %p59 = scmp.ne.s32.totalorder %s42, %s58
      %p60 = scmp.eq.s32.totalorder %s20, 0
      %p61 = por %p59, %p60
      %s63 = sadd.s32 %s62, 1
      %p66 = scmp.eq.s32.totalorder %s14, 3
      %p67 = scmp.ne.s32.totalorder %s62, %s64
      %p68 = scmp.eq.s32.totalorder %s14, 0
      %p69 = por %p67, %p68
      %p70 = scmp.ne.s32.totalorder %s62, %s64
      %p71 = scmp.eq.s32.totalorder %s19, 3
      %p72 = por %p70, %p71
      %p73 = scmp.ne.s32.totalorder %s64, %s65
      %p74 = scmp.eq.s32.totalorder %s19, 0
      %p75 = por %p73, %p74
      %p76 = scmp.ne.s32.totalorder %s64, %s65
      %p77 = scmp.eq.s32.totalorder %s20, 3
      %p78 = por %p76, %p77
      %p80 = scmp.ne.s32.totalorder %s65, %s79
      %p81 = scmp.eq.s32.totalorder %s20, 0
      %p82 = por %p80, %p81
      %s83 = ssub.s32 %s21, %s33
      %s84 = ssub.s32 %s22, %s29
      %s85 = sor.u32 %s83, %s84
      %p86 = scmp.eq.s32.totalorder %s85, 0
      %s88 = sadd.s32 %s87, 1
      %s89 = scalar_select %p86, %s87, %s88
      %p92 = pneg %p86
      %p93 = scmp.eq.s32.totalorder %s14, 3
      %p94 = por %p92, %p93
      %p95 = scmp.ne.s32.totalorder %s87, %s90
      %p96 = scmp.eq.s32.totalorder %s14, 0
      %p97 = por %p95, %p96
      %p98 = scmp.ne.s32.totalorder %s87, %s90
      %p99 = scmp.eq.s32.totalorder %s19, 3
      %p100 = por %p98, %p99
      %p101 = scmp.ne.s32.totalorder %s90, %s91
      %p102 = scmp.eq.s32.totalorder %s19, 0
      %p103 = por %p101, %p102
      %p104 = scmp.ne.s32.totalorder %s90, %s91
      %p105 = scmp.eq.s32.totalorder %s20, 3
      %p106 = por %p104, %p105
      %p108 = scmp.ne.s32.totalorder %s91, %s107
      %p109 = scmp.eq.s32.totalorder %s20, 0
      %p110 = por %p108, %p109
      %s111 = ssub.s32 %s21, %s33
      %p112 = scmp.eq.s32.totalorder %s111, 0
      %s114 = sadd.s32 %s113, 1
      %s115 = scalar_select %p112, %s113, %s114
      %p118 = pneg %p112
      %p119 = scmp.eq.s32.totalorder %s14, 3
      %p120 = por %p118, %p119
      %p121 = scmp.ne.s32.totalorder %s113, %s116
      %p122 = scmp.eq.s32.totalorder %s14, 0
      %p123 = por %p121, %p122
      %p124 = scmp.ne.s32.totalorder %s113, %s116
      %p125 = scmp.eq.s32.totalorder %s19, 3
      %p126 = por %p124, %p125
      %p127 = scmp.ne.s32.totalorder %s116, %s117
      %p128 = scmp.eq.s32.totalorder %s19, 0
      %p129 = por %p127, %p128
      %p130 = scmp.ne.s32.totalorder %s116, %s117
      %p131 = scmp.eq.s32.totalorder %s20, 3
      %p132 = por %p130, %p131
      %p134 = scmp.ne.s32.totalorder %s117, %s133
      %p135 = scmp.eq.s32.totalorder %s20, 0
      %p136 = por %p134, %p135
      %s137 = ssub.s32 %s21, %s33
      %p138 = scmp.eq.s32.totalorder %s137, 0
      %s140 = sadd.s32 %s139, 1
      %s141 = scalar_select %p138, %s139, %s140
      %p144 = pneg %p138
      %p145 = scmp.eq.s32.totalorder %s14, 3
      %p146 = por %p144, %p145
      %p147 = scmp.ne.s32.totalorder %s139, %s142
      %p148 = scmp.eq.s32.totalorder %s14, 0
      %p149 = por %p147, %p148
      %p150 = scmp.ne.s32.totalorder %s139, %s142
      %p151 = scmp.eq.s32.totalorder %s19, 3
      %p152 = por %p150, %p151
      %p153 = scmp.ne.s32.totalorder %s142, %s143
      %p154 = scmp.eq.s32.totalorder %s19, 0
      %p155 = por %p153, %p154
      %p156 = scmp.ne.s32.totalorder %s142, %s143
      %p157 = scmp.eq.s32.totalorder %s20, 3
      %p158 = por %p156, %p157
      %p160 = scmp.ne.s32.totalorder %s143, %s159
      %p161 = scmp.eq.s32.totalorder %s20, 0
      %p162 = por %p160, %p161
      %p163 = scmp.le.s32.totalorder 1, %s14
      %p164 = scmp.lt.s32.totalorder %s14, 5
      %p165 = pnand %p163, %p164
      %p166 = pneg %p165
      // Predicated region
      $region9: #{tpu_custom_call.1} parent=5 // pred_check
        _
      $region10: #{tpu_custom_call.1} parent=5 // pred_check_branch
        %168 = sbr.rel (%p165) target = $region12
      $region11: #{tpu_custom_call.1} parent=5 // pred_region
        %s169 = ssub.s32 %s14, 1
        // Predicated region
        $region13: #{tpu_custom_call.1} parent=11 // pred_check
          %p170 = pneg %p75
        $region14: #{tpu_custom_call.1} parent=11 // pred_check_branch
          %172 = sbr.rel (%p170) target = $region16
        $region15: #{tpu_custom_call.1} parent=11 // pred_region
          _
        $region16: #{tpu_custom_call.1} parent=11 // pred_fallthru
          _
      $region12: #{tpu_custom_call.1} parent=5 // pred_fallthru
        _
      %p173 = scmp.lt.s32.totalorder %s14, 4
      // Predicated region
      $region17: #{tpu_custom_call.1} parent=5 // pred_check
        %p174 = pneg %p173
      $region18: #{tpu_custom_call.1} parent=5 // pred_check_branch
        %176 = sbr.rel (%p174) target = $region20
      $region19: #{tpu_custom_call.1} parent=5 // pred_region
        // Predicated region
        $region21: #{tpu_custom_call.1} parent=19 // pred_check
          %p177 = pneg %p48
        $region22: #{tpu_custom_call.1} parent=19 // pred_check_branch
          %179 = sbr.rel (%p177) target = $region24
        $region23: #{tpu_custom_call.1} parent=19 // pred_region
          %p180 = scmp.lt.s32.totalorder %s21, 1
          %s181 = scalar_select %p180, %s21, 1
          %p182 = scmp.lt.s32.totalorder %s22, 1
          %s183 = scalar_select %p182, %s22, 1
          %s184 = smul.addr %s181, 2
          %s185 = sadd.s32 %s183, %s184
          %s186 = smul.addr %s185, 4
          %s187 = scalar_lea.vmem %s0, %s186
        $region24: #{tpu_custom_call.1} parent=19 // pred_fallthru
          _
      $region20: #{tpu_custom_call.1} parent=5 // pred_fallthru
        _
      %p188 = scmp.le.s32.totalorder 1, %s14
      %p189 = scmp.lt.s32.totalorder %s14, 5
      %p190 = pnand %p188, %p189
      %p191 = pneg %p190
      // Predicated region
      $region25: #{tpu_custom_call.1} parent=5 // pred_check
        _
      $region26: #{tpu_custom_call.1} parent=5 // pred_check_branch
        %193 = sbr.rel (%p190) target = $region28
      $region27: #{tpu_custom_call.1} parent=5 // pred_region
        %s194 = ssub.s32 %s14, 1
        %p195 = scmp.lt.s32.totalorder %s23, 1
        %s196 = scalar_select %p195, %s23, 1
        %p197 = scmp.lt.s32.totalorder %s24, 1
        %s198 = scalar_select %p197, %s24, 1
        %s199 = smul.addr %s196, 2
        %s200 = sadd.s32 %s198, %s199
        %s201 = smul.addr %s200, 4
        %s202 = scalar_lea.vmem %s0, %s201
        %p203 = pneg %p54
        %p204 = pneg %p51
        %p205 = pneg %p75
        %p206 = pneg %p72
        %p207 = pneg %p103
        %p208 = pneg %p100
        %s209 = sand.u32 %s90, 1
        %s210 = scalar_lea.sflag [#allocation5], %s209
        %s211 = sand.u32 %s90, 1
        %s212 = smul.addr %s211, 256
        %s213 = scalar_lea.vmem [#allocation4], %s212
        %p214 = pneg %p129
        %p215 = pneg %p126
        %p216 = scmp.lt.s32.totalorder %s23, 1
        %s217 = scalar_select %p216, %s23, 1
        %s218 = smul.addr %s217, 32
        %s219 = smul.addr %s218, 8
        %s220 = scalar_lea.vmem %s3, %s219
        %p221 = pneg %p155
        %p222 = pneg %p152
        %p223 = scmp.lt.s32.totalorder %s23, 1
        %s224 = scalar_select %p223, %s23, 1
        %s225 = smul.addr %s224, 32
        %s226 = smul.addr %s225, 8
        %s227 = scalar_lea.vmem %s4, %s226
        %p228 = scmp.lt.s32.totalorder %s23, 1
        %s229 = scalar_select %p228, %s23, 1
        %p230 = scmp.lt.s32.totalorder %s24, 1
        %s231 = scalar_select %p230, %s24, 1
        %s232 = smul.addr %s229, 2
        %s233 = sadd.s32 %s231, %s232
        %s234 = smul.addr %s233, 4
        %s235 = scalar_lea.vmem %s0, %s234
        %p236 = scmp.lt.s32.totalorder %s23, 1
        %s237 = scalar_select %p236, %s23, 1
        %s238 = smul.addr %s237, 32
        %s239 = smul.addr %s238, 8
        %s240 = scalar_lea.vmem %s3, %s239
        %p241 = scmp.lt.s32.totalorder %s23, 1
        %s242 = scalar_select %p241, %s23, 1
        %s243 = smul.addr %s242, 32
        %s244 = smul.addr %s243, 8
        %s245 = scalar_lea.vmem %s4, %s244
        %p246 = scmp.eq.s32.totalorder %s24, 0
        // Predicated region
        $region29: #{tpu_custom_call.1} parent=27 // pred_check
          %p247 = pneg %p246
        $region30: #{tpu_custom_call.1} parent=27 // pred_check_branch
          %249 = sbr.rel (%p247) target = $region32
        $region31: #{tpu_custom_call.1} parent=27 // pred_region
          %vm250 = vcmask 7168
          %251 = vst.msk [vmem:[#allocation2] sm:$0xff] %vm250, 0.0
          %252 = vst.msk [vmem:[#allocation2 + $0x8] sm:$0xff] %vm250, 0.0
          %253 = vst.msk [vmem:[#allocation2 + $0x10] sm:$0xff] %vm250, 0.0
          %254 = vst.msk [vmem:[#allocation2 + $0x18] sm:$0xff] %vm250, 0.0
          %255 = vst.msk [vmem:[#allocation2 + $0x20] sm:$0xff] %vm250, 0.0
          %256 = vst.msk [vmem:[#allocation2 + $0x28] sm:$0xff] %vm250, 0.0
          %257 = vst.msk [vmem:[#allocation2 + $0x30] sm:$0xff] %vm250, 0.0
          %258 = vst.msk [vmem:[#allocation2 + $0x38] sm:$0xff] %vm250, 0.0
          %259 = vst.msk [vmem:[#allocation2 + $0x40] sm:$0xff] %vm250, 0.0
          %260 = vst.msk [vmem:[#allocation2 + $0x48] sm:$0xff] %vm250, 0.0
          %261 = vst.msk [vmem:[#allocation2 + $0x50] sm:$0xff] %vm250, 0.0
          %262 = vst.msk [vmem:[#allocation2 + $0x58] sm:$0xff] %vm250, 0.0
          %263 = vst.msk [vmem:[#allocation2 + $0x60] sm:$0xff] %vm250, 0.0
          %264 = vst.msk [vmem:[#allocation2 + $0x68] sm:$0xff] %vm250, 0.0
          %265 = vst.msk [vmem:[#allocation2 + $0x70] sm:$0xff] %vm250, 0.0
          %266 = vst.msk [vmem:[#allocation2 + $0x78] sm:$0xff] %vm250, 0.0
          %267 = vst.msk [vmem:[#allocation2 + $0x80] sm:$0xff] %vm250, 0.0
          %268 = vst.msk [vmem:[#allocation2 + $0x88] sm:$0xff] %vm250, 0.0
          %269 = vst.msk [vmem:[#allocation2 + $0x90] sm:$0xff] %vm250, 0.0
          %270 = vst.msk [vmem:[#allocation2 + $0x98] sm:$0xff] %vm250, 0.0
          %271 = vst.msk [vmem:[#allocation2 + $0xa0] sm:$0xff] %vm250, 0.0
          %272 = vst.msk [vmem:[#allocation2 + $0xa8] sm:$0xff] %vm250, 0.0
          %273 = vst.msk [vmem:[#allocation2 + $0xb0] sm:$0xff] %vm250, 0.0
          %274 = vst.msk [vmem:[#allocation2 + $0xb8] sm:$0xff] %vm250, 0.0
          %275 = vst.msk [vmem:[#allocation2 + $0xc0] sm:$0xff] %vm250, 0.0
          %276 = vst.msk [vmem:[#allocation2 + $0xc8] sm:$0xff] %vm250, 0.0
          %277 = vst.msk [vmem:[#allocation2 + $0xd0] sm:$0xff] %vm250, 0.0
          %278 = vst.msk [vmem:[#allocation2 + $0xd8] sm:$0xff] %vm250, 0.0
          %279 = vst.msk [vmem:[#allocation2 + $0xe0] sm:$0xff] %vm250, 0.0
          %280 = vst.msk [vmem:[#allocation2 + $0xe8] sm:$0xff] %vm250, 0.0
          %281 = vst.msk [vmem:[#allocation2 + $0xf0] sm:$0xff] %vm250, 0.0
          %282 = vst.msk [vmem:[#allocation2 + $0xf8] sm:$0xff] %vm250, 0.0
          %283 = vst.msk [vmem:[#allocation3] sm:$0xff] %vm250, 0.0
          %284 = vst.msk [vmem:[#allocation3 + $0x8] sm:$0xff] %vm250, 0.0
          %285 = vst.msk [vmem:[#allocation3 + $0x10] sm:$0xff] %vm250, 0.0
          %286 = vst.msk [vmem:[#allocation3 + $0x18] sm:$0xff] %vm250, 0.0
          %287 = vst.msk [vmem:[#allocation3 + $0x20] sm:$0xff] %vm250, 0.0
          %288 = vst.msk [vmem:[#allocation3 + $0x28] sm:$0xff] %vm250, 0.0
          %289 = vst.msk [vmem:[#allocation3 + $0x30] sm:$0xff] %vm250, 0.0
          %290 = vst.msk [vmem:[#allocation3 + $0x38] sm:$0xff] %vm250, 0.0
          %291 = vst.msk [vmem:[#allocation3 + $0x40] sm:$0xff] %vm250, 0.0
          %292 = vst.msk [vmem:[#allocation3 + $0x48] sm:$0xff] %vm250, 0.0
          %293 = vst.msk [vmem:[#allocation3 + $0x50] sm:$0xff] %vm250, 0.0
          %294 = vst.msk [vmem:[#allocation3 + $0x58] sm:$0xff] %vm250, 0.0
          %295 = vst.msk [vmem:[#allocation3 + $0x60] sm:$0xff] %vm250, 0.0
          %296 = vst.msk [vmem:[#allocation3 + $0x68] sm:$0xff] %vm250, 0.0
          %297 = vst.msk [vmem:[#allocation3 + $0x70] sm:$0xff] %vm250, 0.0
          %298 = vst.msk [vmem:[#allocation3 + $0x78] sm:$0xff] %vm250, 0.0
          %299 = vst.msk [vmem:[#allocation3 + $0x80] sm:$0xff] %vm250, 0.0
          %300 = vst.msk [vmem:[#allocation3 + $0x88] sm:$0xff] %vm250, 0.0
          %301 = vst.msk [vmem:[#allocation3 + $0x90] sm:$0xff] %vm250, 0.0
          %302 = vst.msk [vmem:[#allocation3 + $0x98] sm:$0xff] %vm250, 0.0
          %303 = vst.msk [vmem:[#allocation3 + $0xa0] sm:$0xff] %vm250, 0.0
          %304 = vst.msk [vmem:[#allocation3 + $0xa8] sm:$0xff] %vm250, 0.0
          %305 = vst.msk [vmem:[#allocation3 + $0xb0] sm:$0xff] %vm250, 0.0
          %306 = vst.msk [vmem:[#allocation3 + $0xb8] sm:$0xff] %vm250, 0.0
          %307 = vst.msk [vmem:[#allocation3 + $0xc0] sm:$0xff] %vm250, 0.0
          %308 = vst.msk [vmem:[#allocation3 + $0xc8] sm:$0xff] %vm250, 0.0
          %309 = vst.msk [vmem:[#allocation3 + $0xd0] sm:$0xff] %vm250, 0.0
          %310 = vst.msk [vmem:[#allocation3 + $0xd8] sm:$0xff] %vm250, 0.0
          %311 = vst.msk [vmem:[#allocation3 + $0xe0] sm:$0xff] %vm250, 0.0
          %312 = vst.msk [vmem:[#allocation3 + $0xe8] sm:$0xff] %vm250, 0.0
          %313 = vst.msk [vmem:[#allocation3 + $0xf0] sm:$0xff] %vm250, 0.0
          %314 = vst.msk [vmem:[#allocation3 + $0xf8] sm:$0xff] %vm250, 0.0
        $region32: #{tpu_custom_call.1} parent=27 // pred_fallthru
          _
        %v315 = vld [vmem:[%s1] sm:$0xff]
        %v316 = vld [vmem:[%s1 + $0x8] sm:$0xff]
        %v317 = vld [vmem:[%s1 + $0x10] sm:$0xff]
        %v318 = vld [vmem:[%s1 + $0x18] sm:$0xff]
        %v319 = vld [vmem:[%s1 + $0x20] sm:$0xff]
        %v320 = vld [vmem:[%s1 + $0x28] sm:$0xff]
        %v321 = vld [vmem:[%s1 + $0x30] sm:$0xff]
        %v322 = vld [vmem:[%s1 + $0x38] sm:$0xff]
        %v323 = vld [vmem:[%s1 + $0x40] sm:$0xff]
        %v324 = vld [vmem:[%s1 + $0x48] sm:$0xff]
        %v325 = vld [vmem:[%s1 + $0x50] sm:$0xff]
        %v326 = vld [vmem:[%s1 + $0x58] sm:$0xff]
        %v327 = vld [vmem:[%s1 + $0x60] sm:$0xff]
        %v328 = vld [vmem:[%s1 + $0x68] sm:$0xff]
        %v329 = vld [vmem:[%s1 + $0x70] sm:$0xff]
        %v330 = vld [vmem:[%s1 + $0x78] sm:$0xff]
        %v331 = vld [vmem:[%s1 + $0x80] sm:$0xff]
        %v332 = vld [vmem:[%s1 + $0x88] sm:$0xff]
        %v333 = vld [vmem:[%s1 + $0x90] sm:$0xff]
        %v334 = vld [vmem:[%s1 + $0x98] sm:$0xff]
        %v335 = vld [vmem:[%s1 + $0xa0] sm:$0xff]
        %v336 = vld [vmem:[%s1 + $0xa8] sm:$0xff]
        %v337 = vld [vmem:[%s1 + $0xb0] sm:$0xff]
        %v338 = vld [vmem:[%s1 + $0xb8] sm:$0xff]
        %v339 = vld [vmem:[%s1 + $0xc0] sm:$0xff]
        %v340 = vld [vmem:[%s1 + $0xc8] sm:$0xff]
        %v341 = vld [vmem:[%s1 + $0xd0] sm:$0xff]
        %v342 = vld [vmem:[%s1 + $0xd8] sm:$0xff]
        %v343 = vld [vmem:[%s1 + $0xe0] sm:$0xff]
        %v344 = vld [vmem:[%s1 + $0xe8] sm:$0xff]
        %v345 = vld [vmem:[%s1 + $0xf0] sm:$0xff]
        %v346 = vld [vmem:[%s1 + $0xf8] sm:$0xff]
        %v347 = vld [vmem:[%s235] sm:$0xf]
        %vm348 = vcmask 31744
        %v350 = vsel %vm348, %v315, 0
        %v353 = vsel %vm348, %v316, 0
        %v356 = vsel %vm348, %v317, 0
        %v359 = vsel %vm348, %v318, 0
        %v362 = vsel %vm348, %v319, 0
        %v365 = vsel %vm348, %v320, 0
        %v368 = vsel %vm348, %v321, 0
        %v371 = vsel %vm348, %v322, 0
        %v374 = vsel %vm348, %v323, 0
        %v377 = vsel %vm348, %v324, 0
        %v380 = vsel %vm348, %v325, 0
        %v383 = vsel %vm348, %v326, 0
        %v386 = vsel %vm348, %v327, 0
        %v389 = vsel %vm348, %v328, 0
        %v392 = vsel %vm348, %v329, 0
        %v395 = vsel %vm348, %v330, 0
        %v398 = vsel %vm348, %v331, 0
        %v401 = vsel %vm348, %v332, 0
        %v404 = vsel %vm348, %v333, 0
        %v407 = vsel %vm348, %v334, 0
        %v410 = vsel %vm348, %v335, 0
        %v413 = vsel %vm348, %v336, 0
        %v416 = vsel %vm348, %v337, 0
        %v419 = vsel %vm348, %v338, 0
        %v422 = vsel %vm348, %v339, 0
        %v425 = vsel %vm348, %v340, 0
        %v428 = vsel %vm348, %v341, 0
        %v431 = vsel %vm348, %v342, 0
        %v434 = vsel %vm348, %v343, 0
        %v437 = vsel %vm348, %v344, 0
        %v440 = vsel %vm348, %v345, 0
        %v443 = vsel %vm348, %v346, 0
        %vm445 = vcmask 1043456
        %v447 = vsel %vm445, %v347, 0
        %449 = vmatprep.subr.mxu0 0.0
        %450 = vmatpush1.msra.mxu0 0.0
        %451 = vmatprep.subr.mxu0 0.0
        %452 = vmatpush1.msra.mxu0 0.0
        %453 = vmatprep.subr.mxu0 0.0
        %454 = vmatpush1.msra.mxu0 0.0
        %455 = vmatprep.subr.mxu0 0.0
        %456 = vmatpush1.msra.mxu0 0.0
        %457 = vmatprep.subr.mxu0 0.0
        %458 = vmatpush1.msra.mxu0 0.0
        %459 = vmatprep.subr.mxu0 0.0
        %460 = vmatpush1.msra.mxu0 0.0
        %461 = vmatprep.subr.mxu0 0.0
        %462 = vmatpush1.msra.mxu0 0.0
        %463 = vmatprep.subr.mxu0 0.0
        %464 = vmatpush1.msra.mxu0 0.0
        %465 = vmatprep.subr.mxu0 0.0
        %466 = vmatpush1.msra.mxu0 0.0
        %467 = vmatprep.subr.mxu0 0.0
        %468 = vmatpush1.msra.mxu0 0.0
        %469 = vmatprep.subr.mxu0 0.0
        %470 = vmatpush1.msra.mxu0 0.0
        %471 = vmatprep.subr.mxu0 0.0
        %472 = vmatpush1.msra.mxu0 0.0
        %473 = vmatprep.subr.mxu0 0.0
        %474 = vmatpush1.msra.mxu0 0.0
        %475 = vmatprep.subr.mxu0 0.0
        %476 = vmatpush1.msra.mxu0 0.0
        %477 = vmatprep.subr.mxu0 0.0
        %478 = vmatpush1.msra.mxu0 0.0
        %479 = vmatprep.subr.mxu0 0.0
        %480 = vmatpush1.msra.mxu0 %v447
        %481 = vmatprep.subr.mxu0 0.0
        %482 = vmatpush2.msra.mxu0 0.0
        %483 = vmatprep.subr.mxu0 0.0
        %484 = vmatpush2.msra.mxu0 0.0
        %485 = vmatprep.subr.mxu0 0.0
        %486 = vmatpush2.msra.mxu0 0.0
        %487 = vmatprep.subr.mxu0 0.0
        %488 = vmatpush2.msra.mxu0 0.0
        %489 = vmatprep.subr.mxu0 0.0
        %490 = vmatpush2.msra.mxu0 0.0
        %491 = vmatprep.subr.mxu0 0.0
        %492 = vmatpush2.msra.mxu0 0.0
        %493 = vmatprep.subr.mxu0 0.0
        %494 = vmatpush2.msra.mxu0 0.0
        %495 = vmatprep.subr.mxu0 0.0
        %496 = vmatpush2.msra.mxu0 0.0
        %497 = vmatprep.subr.mxu0 0.0
        %498 = vmatpush2.msra.mxu0 0.0
        %499 = vmatprep.subr.mxu0 0.0
        %500 = vmatpush2.msra.mxu0 0.0
        %501 = vmatprep.subr.mxu0 0.0
        %502 = vmatpush2.msra.mxu0 0.0
        %503 = vmatprep.subr.mxu0 0.0
        %504 = vmatpush2.msra.mxu0 0.0
        %505 = vmatprep.subr.mxu0 0.0
        %506 = vmatpush2.msra.mxu0 0.0
        %507 = vmatprep.subr.mxu0 0.0
        %508 = vmatpush2.msra.mxu0 0.0
        %509 = vmatprep.subr.mxu0 0.0
        %510 = vmatpush2.msra.mxu0 0.0
        %511 = vmatprep.subr.mxu0 0.0
        %512 = vmatpush2.msra.mxu0 0.0
        %513 = vmatprep.mubr.f32.mxu0 0.0
        %514 = vmatmul.mubr.f32.gmra.mxu0 %v350
        %v515 = vpop.f32.mrf.mxu0
        %v516 = vadd.f32 0.0, %v515
        %v517 = vpop.f32.mrf.mxu0
        %518 = vmatprep.mubr.f32.mxu0 0.0
        %519 = vmatmul.mubr.f32.gmra.mxu0 %v353
        %v520 = vpop.f32.mrf.mxu0
        %v521 = vadd.f32 0.0, %v520
        %v522 = vpop.f32.mrf.mxu0
        %523 = vmatprep.mubr.f32.mxu0 0.0
        %524 = vmatmul.mubr.f32.gmra.mxu0 %v356
        %v525 = vpop.f32.mrf.mxu0
        %v526 = vadd.f32 0.0, %v525
        %v527 = vpop.f32.mrf.mxu0
        %528 = vmatprep.mubr.f32.mxu0 0.0
        %529 = vmatmul.mubr.f32.gmra.mxu0 %v359
        %v530 = vpop.f32.mrf.mxu0
        %v531 = vadd.f32 0.0, %v530
        %v532 = vpop.f32.mrf.mxu0
        %533 = vmatprep.mubr.f32.mxu0 0.0
        %534 = vmatmul.mubr.f32.gmra.mxu0 %v362
        %v535 = vpop.f32.mrf.mxu0
        %v536 = vadd.f32 0.0, %v535
        %v537 = vpop.f32.mrf.mxu0
        %538 = vmatprep.mubr.f32.mxu0 0.0
        %539 = vmatmul.mubr.f32.gmra.mxu0 %v365
        %v540 = vpop.f32.mrf.mxu0
        %v541 = vadd.f32 0.0, %v540
        %v542 = vpop.f32.mrf.mxu0
        %543 = vmatprep.mubr.f32.mxu0 0.0
        %544 = vmatmul.mubr.f32.gmra.mxu0 %v368
        %v545 = vpop.f32.mrf.mxu0
        %v546 = vadd.f32 0.0, %v545
        %v547 = vpop.f32.mrf.mxu0
        %548 = vmatprep.mubr.f32.mxu0 0.0
        %549 = vmatmul.mubr.f32.gmra.mxu0 %v371
        %v550 = vpop.f32.mrf.mxu0
        %v551 = vadd.f32 0.0, %v550
        %v552 = vpop.f32.mrf.mxu0
        %553 = vmatprep.mubr.f32.mxu0 0.0
        %554 = vmatmul.mubr.f32.gmra.mxu0 %v374
        %v555 = vpop.f32.mrf.mxu0
        %v556 = vadd.f32 0.0, %v555
        %v557 = vpop.f32.mrf.mxu0
        %558 = vmatprep.mubr.f32.mxu0 0.0
        %559 = vmatmul.mubr.f32.gmra.mxu0 %v377
        %v560 = vpop.f32.mrf.mxu0
        %v561 = vadd.f32 0.0, %v560
        %v562 = vpop.f32.mrf.mxu0
        %563 = vmatprep.mubr.f32.mxu0 0.0
        %564 = vmatmul.mubr.f32.gmra.mxu0 %v380
        %v565 = vpop.f32.mrf.mxu0
        %v566 = vadd.f32 0.0, %v565
        %v567 = vpop.f32.mrf.mxu0
        %568 = vmatprep.mubr.f32.mxu0 0.0
        %569 = vmatmul.mubr.f32.gmra.mxu0 %v383
        %v570 = vpop.f32.mrf.mxu0
        %v571 = vadd.f32 0.0, %v570
        %v572 = vpop.f32.mrf.mxu0
        %573 = vmatprep.mubr.f32.mxu0 0.0
        %574 = vmatmul.mubr.f32.gmra.mxu0 %v386
        %v575 = vpop.f32.mrf.mxu0
        %v576 = vadd.f32 0.0, %v575
        %v577 = vpop.f32.mrf.mxu0
        %578 = vmatprep.mubr.f32.mxu0 0.0
        %579 = vmatmul.mubr.f32.gmra.mxu0 %v389
        %v580 = vpop.f32.mrf.mxu0
        %v581 = vadd.f32 0.0, %v580
        %v582 = vpop.f32.mrf.mxu0
        %583 = vmatprep.mubr.f32.mxu0 0.0
        %584 = vmatmul.mubr.f32.gmra.mxu0 %v392
        %v585 = vpop.f32.mrf.mxu0
        %v586 = vadd.f32 0.0, %v585
        %v587 = vpop.f32.mrf.mxu0
        %588 = vmatprep.mubr.f32.mxu0 0.0
        %589 = vmatmul.mubr.f32.gmra.mxu0 %v395
        %v590 = vpop.f32.mrf.mxu0
        %v591 = vadd.f32 0.0, %v590
        %v592 = vpop.f32.mrf.mxu0
        %593 = vmatprep.mubr.f32.mxu0 0.0
        %594 = vmatmul.mubr.f32.gmra.mxu0 %v398
        %v595 = vpop.f32.mrf.mxu0
        %v596 = vadd.f32 0.0, %v595
        %v597 = vpop.f32.mrf.mxu0
        %598 = vmatprep.mubr.f32.mxu0 0.0
        %599 = vmatmul.mubr.f32.gmra.mxu0 %v401
        %v600 = vpop.f32.mrf.mxu0
        %v601 = vadd.f32 0.0, %v600
        %v602 = vpop.f32.mrf.mxu0
        %603 = vmatprep.mubr.f32.mxu0 0.0
        %604 = vmatmul.mubr.f32.gmra.mxu0 %v404
        %v605 = vpop.f32.mrf.mxu0
        %v606 = vadd.f32 0.0, %v605
        %v607 = vpop.f32.mrf.mxu0
        %608 = vmatprep.mubr.f32.mxu0 0.0
        %609 = vmatmul.mubr.f32.gmra.mxu0 %v407
        %v610 = vpop.f32.mrf.mxu0
        %v611 = vadd.f32 0.0, %v610
        %v612 = vpop.f32.mrf.mxu0
        %613 = vmatprep.mubr.f32.mxu0 0.0
        %614 = vmatmul.mubr.f32.gmra.mxu0 %v410
        %v615 = vpop.f32.mrf.mxu0
        %v616 = vadd.f32 0.0, %v615
        %v617 = vpop.f32.mrf.mxu0
        %618 = vmatprep.mubr.f32.mxu0 0.0
        %619 = vmatmul.mubr.f32.gmra.mxu0 %v413
        %v620 = vpop.f32.mrf.mxu0
        %v621 = vadd.f32 0.0, %v620
        %v622 = vpop.f32.mrf.mxu0
        %623 = vmatprep.mubr.f32.mxu0 0.0
        %624 = vmatmul.mubr.f32.gmra.mxu0 %v416
        %v625 = vpop.f32.mrf.mxu0
        %v626 = vadd.f32 0.0, %v625
        %v627 = vpop.f32.mrf.mxu0
        %628 = vmatprep.mubr.f32.mxu0 0.0
        %629 = vmatmul.mubr.f32.gmra.mxu0 %v419
        %v630 = vpop.f32.mrf.mxu0
        %v631 = vadd.f32 0.0, %v630
        %v632 = vpop.f32.mrf.mxu0
        %633 = vmatprep.mubr.f32.mxu0 0.0
        %634 = vmatmul.mubr.f32.gmra.mxu0 %v422
        %v635 = vpop.f32.mrf.mxu0
        %v636 = vadd.f32 0.0, %v635
        %v637 = vpop.f32.mrf.mxu0
        %638 = vmatprep.mubr.f32.mxu0 0.0
        %639 = vmatmul.mubr.f32.gmra.mxu0 %v425
        %v640 = vpop.f32.mrf.mxu0
        %v641 = vadd.f32 0.0, %v640
        %v642 = vpop.f32.mrf.mxu0
        %643 = vmatprep.mubr.f32.mxu0 0.0
        %644 = vmatmul.mubr.f32.gmra.mxu0 %v428
        %v645 = vpop.f32.mrf.mxu0
        %v646 = vadd.f32 0.0, %v645
        %v647 = vpop.f32.mrf.mxu0
        %648 = vmatprep.mubr.f32.mxu0 0.0
        %649 = vmatmul.mubr.f32.gmra.mxu0 %v431
        %v650 = vpop.f32.mrf.mxu0
        %v651 = vadd.f32 0.0, %v650
        %v652 = vpop.f32.mrf.mxu0
        %653 = vmatprep.mubr.f32.mxu0 0.0
        %654 = vmatmul.mubr.f32.gmra.mxu0 %v434
        %v655 = vpop.f32.mrf.mxu0
        %v656 = vadd.f32 0.0, %v655
        %v657 = vpop.f32.mrf.mxu0
        %658 = vmatprep.mubr.f32.mxu0 0.0
        %659 = vmatmul.mubr.f32.gmra.mxu0 %v437
        %v660 = vpop.f32.mrf.mxu0
        %v661 = vadd.f32 0.0, %v660
        %v662 = vpop.f32.mrf.mxu0
        %663 = vmatprep.mubr.f32.mxu0 0.0
        %664 = vmatmul.mubr.f32.gmra.mxu0 %v440
        %v665 = vpop.f32.mrf.mxu0
        %v666 = vadd.f32 0.0, %v665
        %v667 = vpop.f32.mrf.mxu0
        %668 = vmatprep.mubr.f32.mxu0 0.0
        %669 = vmatmul.mubr.f32.gmra.mxu0 %v443
        %v670 = vpop.f32.mrf.mxu0
        %v671 = vadd.f32 0.0, %v670
        %v672 = vpop.f32.mrf.mxu0
        %673 = vdwg.mxu0
        %v674 = vld [vmem:[#allocation2] sm:$0xff]
        %v675 = vld [vmem:[#allocation2 + $0x8] sm:$0xff]
        %v676 = vld [vmem:[#allocation2 + $0x10] sm:$0xff]
        %v677 = vld [vmem:[#allocation2 + $0x18] sm:$0xff]
        %v678 = vld [vmem:[#allocation2 + $0x20] sm:$0xff]
        %v679 = vld [vmem:[#allocation2 + $0x28] sm:$0xff]
        %v680 = vld [vmem:[#allocation2 + $0x30] sm:$0xff]
        %v681 = vld [vmem:[#allocation2 + $0x38] sm:$0xff]
        %v682 = vld [vmem:[#allocation2 + $0x40] sm:$0xff]
        %v683 = vld [vmem:[#allocation2 + $0x48] sm:$0xff]
        %v684 = vld [vmem:[#allocation2 + $0x50] sm:$0xff]
        %v685 = vld [vmem:[#allocation2 + $0x58] sm:$0xff]
        %v686 = vld [vmem:[#allocation2 + $0x60] sm:$0xff]
        %v687 = vld [vmem:[#allocation2 + $0x68] sm:$0xff]
        %v688 = vld [vmem:[#allocation2 + $0x70] sm:$0xff]
        %v689 = vld [vmem:[#allocation2 + $0x78] sm:$0xff]
        %v690 = vld [vmem:[#allocation2 + $0x80] sm:$0xff]
        %v691 = vld [vmem:[#allocation2 + $0x88] sm:$0xff]
        %v692 = vld [vmem:[#allocation2 + $0x90] sm:$0xff]
        %v693 = vld [vmem:[#allocation2 + $0x98] sm:$0xff]
        %v694 = vld [vmem:[#allocation2 + $0xa0] sm:$0xff]
        %v695 = vld [vmem:[#allocation2 + $0xa8] sm:$0xff]
        %v696 = vld [vmem:[#allocation2 + $0xb0] sm:$0xff]
        %v697 = vld [vmem:[#allocation2 + $0xb8] sm:$0xff]
        %v698 = vld [vmem:[#allocation2 + $0xc0] sm:$0xff]
        %v699 = vld [vmem:[#allocation2 + $0xc8] sm:$0xff]
        %v700 = vld [vmem:[#allocation2 + $0xd0] sm:$0xff]
        %v701 = vld [vmem:[#allocation2 + $0xd8] sm:$0xff]
        %v702 = vld [vmem:[#allocation2 + $0xe0] sm:$0xff]
        %v703 = vld [vmem:[#allocation2 + $0xe8] sm:$0xff]
        %v704 = vld [vmem:[#allocation2 + $0xf0] sm:$0xff]
        %v705 = vld [vmem:[#allocation2 + $0xf8] sm:$0xff]
        %706 = vadd.xlane.f32.xlu0 %v516
        %v707 = vpop.xlane.xlu0 %706
        %708 = vadd.xlane.f32.xlu0 %v521
        %v709 = vpop.xlane.xlu0 %708
        %710 = vadd.xlane.f32.xlu0 %v526
        %v711 = vpop.xlane.xlu0 %710
        %712 = vadd.xlane.f32.xlu0 %v531
        %v713 = vpop.xlane.xlu0 %712
        %714 = vadd.xlane.f32.xlu0 %v536
        %v715 = vpop.xlane.xlu0 %714
        %716 = vadd.xlane.f32.xlu0 %v541
        %v717 = vpop.xlane.xlu0 %716
        %718 = vadd.xlane.f32.xlu0 %v546
        %v719 = vpop.xlane.xlu0 %718
        %720 = vadd.xlane.f32.xlu0 %v551
        %v721 = vpop.xlane.xlu0 %720
        %722 = vadd.xlane.f32.xlu0 %v556
        %v723 = vpop.xlane.xlu0 %722
        %724 = vadd.xlane.f32.xlu0 %v561
        %v725 = vpop.xlane.xlu0 %724
        %726 = vadd.xlane.f32.xlu0 %v566
        %v727 = vpop.xlane.xlu0 %726
        %728 = vadd.xlane.f32.xlu0 %v571
        %v729 = vpop.xlane.xlu0 %728
        %730 = vadd.xlane.f32.xlu0 %v576
        %v731 = vpop.xlane.xlu0 %730
        %732 = vadd.xlane.f32.xlu0 %v581
        %v733 = vpop.xlane.xlu0 %732
        %734 = vadd.xlane.f32.xlu0 %v586
        %v735 = vpop.xlane.xlu0 %734
        %736 = vadd.xlane.f32.xlu0 %v591
        %v737 = vpop.xlane.xlu0 %736
        %738 = vadd.xlane.f32.xlu0 %v596
        %v739 = vpop.xlane.xlu0 %738
        %740 = vadd.xlane.f32.xlu0 %v601
        %v741 = vpop.xlane.xlu0 %740
        %742 = vadd.xlane.f32.xlu0 %v606
        %v743 = vpop.xlane.xlu0 %742
        %744 = vadd.xlane.f32.xlu0 %v611
        %v745 = vpop.xlane.xlu0 %744
        %746 = vadd.xlane.f32.xlu0 %v616
        %v747 = vpop.xlane.xlu0 %746
        %748 = vadd.xlane.f32.xlu0 %v621
        %v749 = vpop.xlane.xlu0 %748
        %750 = vadd.xlane.f32.xlu0 %v626
        %v751 = vpop.xlane.xlu0 %750
        %752 = vadd.xlane.f32.xlu0 %v631
        %v753 = vpop.xlane.xlu0 %752
        %754 = vadd.xlane.f32.xlu0 %v636
        %v755 = vpop.xlane.xlu0 %754
        %756 = vadd.xlane.f32.xlu0 %v641
        %v757 = vpop.xlane.xlu0 %756
        %758 = vadd.xlane.f32.xlu0 %v646
        %v759 = vpop.xlane.xlu0 %758
        %760 = vadd.xlane.f32.xlu0 %v651
        %v761 = vpop.xlane.xlu0 %760
        %762 = vadd.xlane.f32.xlu0 %v656
        %v763 = vpop.xlane.xlu0 %762
        %764 = vadd.xlane.f32.xlu0 %v661
        %v765 = vpop.xlane.xlu0 %764
        %766 = vadd.xlane.f32.xlu0 %v666
        %v767 = vpop.xlane.xlu0 %766
        %768 = vadd.xlane.f32.xlu0 %v671
        %v769 = vpop.xlane.xlu0 %768
        %v770 = vadd.f32 %v674, %v707
        %v771 = vadd.f32 %v675, %v709
        %v772 = vadd.f32 %v676, %v711
        %v773 = vadd.f32 %v677, %v713
        %v774 = vadd.f32 %v678, %v715
        %v775 = vadd.f32 %v679, %v717
        %v776 = vadd.f32 %v680, %v719
        %v777 = vadd.f32 %v681, %v721
        %v778 = vadd.f32 %v682, %v723
        %v779 = vadd.f32 %v683, %v725
        %v780 = vadd.f32 %v684, %v727
        %v781 = vadd.f32 %v685, %v729
        %v782 = vadd.f32 %v686, %v731
        %v783 = vadd.f32 %v687, %v733
        %v784 = vadd.f32 %v688, %v735
        %v785 = vadd.f32 %v689, %v737
        %v786 = vadd.f32 %v690, %v739
        %v787 = vadd.f32 %v691, %v741
        %v788 = vadd.f32 %v692, %v743
        %v789 = vadd.f32 %v693, %v745
        %v790 = vadd.f32 %v694, %v747
        %v791 = vadd.f32 %v695, %v749
        %v792 = vadd.f32 %v696, %v751
        %v793 = vadd.f32 %v697, %v753
        %v794 = vadd.f32 %v698, %v755
        %v795 = vadd.f32 %v699, %v757
        %v796 = vadd.f32 %v700, %v759
        %v797 = vadd.f32 %v701, %v761
        %v798 = vadd.f32 %v702, %v763
        %v799 = vadd.f32 %v703, %v765
        %v800 = vadd.f32 %v704, %v767
        %v801 = vadd.f32 %v705, %v769
        %vm802 = vcmask 7168
        %803 = vst.msk [vmem:[#allocation2] sm:$0xff] %vm802, %v770
        %804 = vst.msk [vmem:[#allocation2 + $0x8] sm:$0xff] %vm802, %v771
        %805 = vst.msk [vmem:[#allocation2 + $0x10] sm:$0xff] %vm802, %v772
        %806 = vst.msk [vmem:[#allocation2 + $0x18] sm:$0xff] %vm802, %v773
        %807 = vst.msk [vmem:[#allocation2 + $0x20] sm:$0xff] %vm802, %v774
        %808 = vst.msk [vmem:[#allocation2 + $0x28] sm:$0xff] %vm802, %v775
        %809 = vst.msk [vmem:[#allocation2 + $0x30] sm:$0xff] %vm802, %v776
        %810 = vst.msk [vmem:[#allocation2 + $0x38] sm:$0xff] %vm802, %v777
        %811 = vst.msk [vmem:[#allocation2 + $0x40] sm:$0xff] %vm802, %v778
        %812 = vst.msk [vmem:[#allocation2 + $0x48] sm:$0xff] %vm802, %v779
        %813 = vst.msk [vmem:[#allocation2 + $0x50] sm:$0xff] %vm802, %v780
        %814 = vst.msk [vmem:[#allocation2 + $0x58] sm:$0xff] %vm802, %v781
        %815 = vst.msk [vmem:[#allocation2 + $0x60] sm:$0xff] %vm802, %v782
        %816 = vst.msk [vmem:[#allocation2 + $0x68] sm:$0xff] %vm802, %v783
        %817 = vst.msk [vmem:[#allocation2 + $0x70] sm:$0xff] %vm802, %v784
        %818 = vst.msk [vmem:[#allocation2 + $0x78] sm:$0xff] %vm802, %v785
        %819 = vst.msk [vmem:[#allocation2 + $0x80] sm:$0xff] %vm802, %v786
        %820 = vst.msk [vmem:[#allocation2 + $0x88] sm:$0xff] %vm802, %v787
        %821 = vst.msk [vmem:[#allocation2 + $0x90] sm:$0xff] %vm802, %v788
        %822 = vst.msk [vmem:[#allocation2 + $0x98] sm:$0xff] %vm802, %v789
        %823 = vst.msk [vmem:[#allocation2 + $0xa0] sm:$0xff] %vm802, %v790
        %824 = vst.msk [vmem:[#allocation2 + $0xa8] sm:$0xff] %vm802, %v791
        %825 = vst.msk [vmem:[#allocation2 + $0xb0] sm:$0xff] %vm802, %v792
        %826 = vst.msk [vmem:[#allocation2 + $0xb8] sm:$0xff] %vm802, %v793
        %827 = vst.msk [vmem:[#allocation2 + $0xc0] sm:$0xff] %vm802, %v794
        %828 = vst.msk [vmem:[#allocation2 + $0xc8] sm:$0xff] %vm802, %v795
        %829 = vst.msk [vmem:[#allocation2 + $0xd0] sm:$0xff] %vm802, %v796
        %830 = vst.msk [vmem:[#allocation2 + $0xd8] sm:$0xff] %vm802, %v797
        %831 = vst.msk [vmem:[#allocation2 + $0xe0] sm:$0xff] %vm802, %v798
        %832 = vst.msk [vmem:[#allocation2 + $0xe8] sm:$0xff] %vm802, %v799
        %833 = vst.msk [vmem:[#allocation2 + $0xf0] sm:$0xff] %vm802, %v800
        %834 = vst.msk [vmem:[#allocation2 + $0xf8] sm:$0xff] %vm802, %v801
        %v835 = vld [vmem:[#allocation3] sm:$0xff]
        %v836 = vld [vmem:[#allocation3 + $0x8] sm:$0xff]
        %v837 = vld [vmem:[#allocation3 + $0x10] sm:$0xff]
        %v838 = vld [vmem:[#allocation3 + $0x18] sm:$0xff]
        %v839 = vld [vmem:[#allocation3 + $0x20] sm:$0xff]
        %v840 = vld [vmem:[#allocation3 + $0x28] sm:$0xff]
        %v841 = vld [vmem:[#allocation3 + $0x30] sm:$0xff]
        %v842 = vld [vmem:[#allocation3 + $0x38] sm:$0xff]
        %v843 = vld [vmem:[#allocation3 + $0x40] sm:$0xff]
        %v844 = vld [vmem:[#allocation3 + $0x48] sm:$0xff]
        %v845 = vld [vmem:[#allocation3 + $0x50] sm:$0xff]
        %v846 = vld [vmem:[#allocation3 + $0x58] sm:$0xff]
        %v847 = vld [vmem:[#allocation3 + $0x60] sm:$0xff]
        %v848 = vld [vmem:[#allocation3 + $0x68] sm:$0xff]
        %v849 = vld [vmem:[#allocation3 + $0x70] sm:$0xff]
        %v850 = vld [vmem:[#allocation3 + $0x78] sm:$0xff]
        %v851 = vld [vmem:[#allocation3 + $0x80] sm:$0xff]
        %v852 = vld [vmem:[#allocation3 + $0x88] sm:$0xff]
        %v853 = vld [vmem:[#allocation3 + $0x90] sm:$0xff]
        %v854 = vld [vmem:[#allocation3 + $0x98] sm:$0xff]
        %v855 = vld [vmem:[#allocation3 + $0xa0] sm:$0xff]
        %v856 = vld [vmem:[#allocation3 + $0xa8] sm:$0xff]
        %v857 = vld [vmem:[#allocation3 + $0xb0] sm:$0xff]
        %v858 = vld [vmem:[#allocation3 + $0xb8] sm:$0xff]
        %v859 = vld [vmem:[#allocation3 + $0xc0] sm:$0xff]
        %v860 = vld [vmem:[#allocation3 + $0xc8] sm:$0xff]
        %v861 = vld [vmem:[#allocation3 + $0xd0] sm:$0xff]
        %v862 = vld [vmem:[#allocation3 + $0xd8] sm:$0xff]
        %v863 = vld [vmem:[#allocation3 + $0xe0] sm:$0xff]
        %v864 = vld [vmem:[#allocation3 + $0xe8] sm:$0xff]
        %v865 = vld [vmem:[#allocation3 + $0xf0] sm:$0xff]
        %v866 = vld [vmem:[#allocation3 + $0xf8] sm:$0xff]
        %v867 = vmul.f32 %v516, %v516
        %v868 = vmul.f32 %v521, %v521
        %v869 = vmul.f32 %v526, %v526
        %v870 = vmul.f32 %v531, %v531
        %v871 = vmul.f32 %v536, %v536
        %v872 = vmul.f32 %v541, %v541
        %v873 = vmul.f32 %v546, %v546
        %v874 = vmul.f32 %v551, %v551
        %v875 = vmul.f32 %v556, %v556
        %v876 = vmul.f32 %v561, %v561
        %v877 = vmul.f32 %v566, %v566
        %v878 = vmul.f32 %v571, %v571
        %v879 = vmul.f32 %v576, %v576
        %v880 = vmul.f32 %v581, %v581
        %v881 = vmul.f32 %v586, %v586
        %v882 = vmul.f32 %v591, %v591
        %v883 = vmul.f32 %v596, %v596
        %v884 = vmul.f32 %v601, %v601
        %v885 = vmul.f32 %v606, %v606
        %v886 = vmul.f32 %v611, %v611
        %v887 = vmul.f32 %v616, %v616
        %v888 = vmul.f32 %v621, %v621
        %v889 = vmul.f32 %v626, %v626
        %v890 = vmul.f32 %v631, %v631
        %v891 = vmul.f32 %v636, %v636
        %v892 = vmul.f32 %v641, %v641
        %v893 = vmul.f32 %v646, %v646
        %v894 = vmul.f32 %v651, %v651
        %v895 = vmul.f32 %v656, %v656
        %v896 = vmul.f32 %v661, %v661
        %v897 = vmul.f32 %v666, %v666
        %v898 = vmul.f32 %v671, %v671
        %899 = vadd.xlane.f32.xlu0 %v867
        %v900 = vpop.xlane.xlu0 %899
        %901 = vadd.xlane.f32.xlu0 %v868
        %v902 = vpop.xlane.xlu0 %901
        %903 = vadd.xlane.f32.xlu0 %v869
        %v904 = vpop.xlane.xlu0 %903
        %905 = vadd.xlane.f32.xlu0 %v870
        %v906 = vpop.xlane.xlu0 %905
        %907 = vadd.xlane.f32.xlu0 %v871
        %v908 = vpop.xlane.xlu0 %907
        %909 = vadd.xlane.f32.xlu0 %v872
        %v910 = vpop.xlane.xlu0 %909
        %911 = vadd.xlane.f32.xlu0 %v873
        %v912 = vpop.xlane.xlu0 %911
        %913 = vadd.xlane.f32.xlu0 %v874
        %v914 = vpop.xlane.xlu0 %913
        %915 = vadd.xlane.f32.xlu0 %v875
        %v916 = vpop.xlane.xlu0 %915
        %917 = vadd.xlane.f32.xlu0 %v876
        %v918 = vpop.xlane.xlu0 %917
        %919 = vadd.xlane.f32.xlu0 %v877
        %v920 = vpop.xlane.xlu0 %919
        %921 = vadd.xlane.f32.xlu0 %v878
        %v922 = vpop.xlane.xlu0 %921
        %923 = vadd.xlane.f32.xlu0 %v879
        %v924 = vpop.xlane.xlu0 %923
        %925 = vadd.xlane.f32.xlu0 %v880
        %v926 = vpop.xlane.xlu0 %925
        %927 = vadd.xlane.f32.xlu0 %v881
        %v928 = vpop.xlane.xlu0 %927
        %929 = vadd.xlane.f32.xlu0 %v882
        %v930 = vpop.xlane.xlu0 %929
        %931 = vadd.xlane.f32.xlu0 %v883
        %v932 = vpop.xlane.xlu0 %931
        %933 = vadd.xlane.f32.xlu0 %v884
        %v934 = vpop.xlane.xlu0 %933
        %935 = vadd.xlane.f32.xlu0 %v885
        %v936 = vpop.xlane.xlu0 %935
        %937 = vadd.xlane.f32.xlu0 %v886
        %v938 = vpop.xlane.xlu0 %937
        %939 = vadd.xlane.f32.xlu0 %v887
        %v940 = vpop.xlane.xlu0 %939
        %941 = vadd.xlane.f32.xlu0 %v888
        %v942 = vpop.xlane.xlu0 %941
        %943 = vadd.xlane.f32.xlu0 %v889
        %v944 = vpop.xlane.xlu0 %943
        %945 = vadd.xlane.f32.xlu0 %v890
        %v946 = vpop.xlane.xlu0 %945
        %947 = vadd.xlane.f32.xlu0 %v891
        %v948 = vpop.xlane.xlu0 %947
        %949 = vadd.xlane.f32.xlu0 %v892
        %v950 = vpop.xlane.xlu0 %949
        %951 = vadd.xlane.f32.xlu0 %v893
        %v952 = vpop.xlane.xlu0 %951
        %953 = vadd.xlane.f32.xlu0 %v894
        %v954 = vpop.xlane.xlu0 %953
        %955 = vadd.xlane.f32.xlu0 %v895
        %v956 = vpop.xlane.xlu0 %955
        %957 = vadd.xlane.f32.xlu0 %v896
        %v958 = vpop.xlane.xlu0 %957
        %959 = vadd.xlane.f32.xlu0 %v897
        %v960 = vpop.xlane.xlu0 %959
        %961 = vadd.xlane.f32.xlu0 %v898
        %v962 = vpop.xlane.xlu0 %961
        %v963 = vadd.f32 %v835, %v900
        %v964 = vadd.f32 %v836, %v902
        %v965 = vadd.f32 %v837, %v904
        %v966 = vadd.f32 %v838, %v906
        %v967 = vadd.f32 %v839, %v908
        %v968 = vadd.f32 %v840, %v910
        %v969 = vadd.f32 %v841, %v912
        %v970 = vadd.f32 %v842, %v914
        %v971 = vadd.f32 %v843, %v916
        %v972 = vadd.f32 %v844, %v918
        %v973 = vadd.f32 %v845, %v920
        %v974 = vadd.f32 %v846, %v922
        %v975 = vadd.f32 %v847, %v924
        %v976 = vadd.f32 %v848, %v926
        %v977 = vadd.f32 %v849, %v928
        %v978 = vadd.f32 %v850, %v930
        %v979 = vadd.f32 %v851, %v932
        %v980 = vadd.f32 %v852, %v934
        %v981 = vadd.f32 %v853, %v936
        %v982 = vadd.f32 %v854, %v938
        %v983 = vadd.f32 %v855, %v940
        %v984 = vadd.f32 %v856, %v942
        %v985 = vadd.f32 %v857, %v944
        %v986 = vadd.f32 %v858, %v946
        %v987 = vadd.f32 %v859, %v948
        %v988 = vadd.f32 %v860, %v950
        %v989 = vadd.f32 %v861, %v952
        %v990 = vadd.f32 %v862, %v954
        %v991 = vadd.f32 %v863, %v956
        %v992 = vadd.f32 %v864, %v958
        %v993 = vadd.f32 %v865, %v960
        %v994 = vadd.f32 %v866, %v962
        %995 = vst.msk [vmem:[#allocation3] sm:$0xff] %vm802, %v963
        %996 = vst.msk [vmem:[#allocation3 + $0x8] sm:$0xff] %vm802, %v964
        %997 = vst.msk [vmem:[#allocation3 + $0x10] sm:$0xff] %vm802, %v965
        %998 = vst.msk [vmem:[#allocation3 + $0x18] sm:$0xff] %vm802, %v966
        %999 = vst.msk [vmem:[#allocation3 + $0x20] sm:$0xff] %vm802, %v967
        %1000 = vst.msk [vmem:[#allocation3 + $0x28] sm:$0xff] %vm802, %v968
        %1001 = vst.msk [vmem:[#allocation3 + $0x30] sm:$0xff] %vm802, %v969
        %1002 = vst.msk [vmem:[#allocation3 + $0x38] sm:$0xff] %vm802, %v970
        %1003 = vst.msk [vmem:[#allocation3 + $0x40] sm:$0xff] %vm802, %v971
        %1004 = vst.msk [vmem:[#allocation3 + $0x48] sm:$0xff] %vm802, %v972
        %1005 = vst.msk [vmem:[#allocation3 + $0x50] sm:$0xff] %vm802, %v973
        %1006 = vst.msk [vmem:[#allocation3 + $0x58] sm:$0xff] %vm802, %v974
        %1007 = vst.msk [vmem:[#allocation3 + $0x60] sm:$0xff] %vm802, %v975
        %1008 = vst.msk [vmem:[#allocation3 + $0x68] sm:$0xff] %vm802, %v976
        %1009 = vst.msk [vmem:[#allocation3 + $0x70] sm:$0xff] %vm802, %v977
        %1010 = vst.msk [vmem:[#allocation3 + $0x78] sm:$0xff] %vm802, %v978
        %1011 = vst.msk [vmem:[#allocation3 + $0x80] sm:$0xff] %vm802, %v979
        %1012 = vst.msk [vmem:[#allocation3 + $0x88] sm:$0xff] %vm802, %v980
        %1013 = vst.msk [vmem:[#allocation3 + $0x90] sm:$0xff] %vm802, %v981
        %1014 = vst.msk [vmem:[#allocation3 + $0x98] sm:$0xff] %vm802, %v982
        %1015 = vst.msk [vmem:[#allocation3 + $0xa0] sm:$0xff] %vm802, %v983
        %1016 = vst.msk [vmem:[#allocation3 + $0xa8] sm:$0xff] %vm802, %v984
        %1017 = vst.msk [vmem:[#allocation3 + $0xb0] sm:$0xff] %vm802, %v985
        %1018 = vst.msk [vmem:[#allocation3 + $0xb8] sm:$0xff] %vm802, %v986
        %1019 = vst.msk [vmem:[#allocation3 + $0xc0] sm:$0xff] %vm802, %v987
        %1020 = vst.msk [vmem:[#allocation3 + $0xc8] sm:$0xff] %vm802, %v988
        %1021 = vst.msk [vmem:[#allocation3 + $0xd0] sm:$0xff] %vm802, %v989
        %1022 = vst.msk [vmem:[#allocation3 + $0xd8] sm:$0xff] %vm802, %v990
        %1023 = vst.msk [vmem:[#allocation3 + $0xe0] sm:$0xff] %vm802, %v991
        %1024 = vst.msk [vmem:[#allocation3 + $0xe8] sm:$0xff] %vm802, %v992
        %1025 = vst.msk [vmem:[#allocation3 + $0xf0] sm:$0xff] %vm802, %v993
        %1026 = vst.msk [vmem:[#allocation3 + $0xf8] sm:$0xff] %vm802, %v994
        %1027 = vst [vmem:[%s213] sm:$0xff] %v516
        %1028 = vst [vmem:[%s213 + $0x8] sm:$0xff] %v521
        %1029 = vst [vmem:[%s213 + $0x10] sm:$0xff] %v526
        %1030 = vst [vmem:[%s213 + $0x18] sm:$0xff] %v531
        %1031 = vst [vmem:[%s213 + $0x20] sm:$0xff] %v536
        %1032 = vst [vmem:[%s213 + $0x28] sm:$0xff] %v541
        %1033 = vst [vmem:[%s213 + $0x30] sm:$0xff] %v546
        %1034 = vst [vmem:[%s213 + $0x38] sm:$0xff] %v551
        %1035 = vst [vmem:[%s213 + $0x40] sm:$0xff] %v556
        %1036 = vst [vmem:[%s213 + $0x48] sm:$0xff] %v561
        %1037 = vst [vmem:[%s213 + $0x50] sm:$0xff] %v566
        %1038 = vst [vmem:[%s213 + $0x58] sm:$0xff] %v571
        %1039 = vst [vmem:[%s213 + $0x60] sm:$0xff] %v576
        %1040 = vst [vmem:[%s213 + $0x68] sm:$0xff] %v581
        %1041 = vst [vmem:[%s213 + $0x70] sm:$0xff] %v586
        %1042 = vst [vmem:[%s213 + $0x78] sm:$0xff] %v591
        %1043 = vst [vmem:[%s213 + $0x80] sm:$0xff] %v596
        %1044 = vst [vmem:[%s213 + $0x88] sm:$0xff] %v601
        %1045 = vst [vmem:[%s213 + $0x90] sm:$0xff] %v606
        %1046 = vst [vmem:[%s213 + $0x98] sm:$0xff] %v611
        %1047 = vst [vmem:[%s213 + $0xa0] sm:$0xff] %v616
        %1048 = vst [vmem:[%s213 + $0xa8] sm:$0xff] %v621
        %1049 = vst [vmem:[%s213 + $0xb0] sm:$0xff] %v626
        %1050 = vst [vmem:[%s213 + $0xb8] sm:$0xff] %v631
        %1051 = vst [vmem:[%s213 + $0xc0] sm:$0xff] %v636
        %1052 = vst [vmem:[%s213 + $0xc8] sm:$0xff] %v641
        %1053 = vst [vmem:[%s213 + $0xd0] sm:$0xff] %v646
        %1054 = vst [vmem:[%s213 + $0xd8] sm:$0xff] %v651
        %1055 = vst [vmem:[%s213 + $0xe0] sm:$0xff] %v656
        %1056 = vst [vmem:[%s213 + $0xe8] sm:$0xff] %v661
        %1057 = vst [vmem:[%s213 + $0xf0] sm:$0xff] %v666
        %1058 = vst [vmem:[%s213 + $0xf8] sm:$0xff] %v671
        %p1059 = scmp.eq.s32.totalorder %s24, 1
        // Predicated region
        $region33: #{tpu_custom_call.1} parent=27 // pred_check
          %p1060 = pneg %p1059
        $region34: #{tpu_custom_call.1} parent=27 // pred_check_branch
          %1062 = sbr.rel (%p1060) target = $region36
        $region35: #{tpu_custom_call.1} parent=27 // pred_region
          %v1063 = vld [vmem:[#allocation2] sm:$0xff]
          %v1064 = vld [vmem:[#allocation2 + $0x8] sm:$0xff]
          %v1065 = vld [vmem:[#allocation2 + $0x10] sm:$0xff]
          %v1066 = vld [vmem:[#allocation2 + $0x18] sm:$0xff]
          %v1067 = vld [vmem:[#allocation2 + $0x20] sm:$0xff]
          %v1068 = vld [vmem:[#allocation2 + $0x28] sm:$0xff]
          %v1069 = vld [vmem:[#allocation2 + $0x30] sm:$0xff]
          %v1070 = vld [vmem:[#allocation2 + $0x38] sm:$0xff]
          %v1071 = vld [vmem:[#allocation2 + $0x40] sm:$0xff]
          %v1072 = vld [vmem:[#allocation2 + $0x48] sm:$0xff]
          %v1073 = vld [vmem:[#allocation2 + $0x50] sm:$0xff]
          %v1074 = vld [vmem:[#allocation2 + $0x58] sm:$0xff]
          %v1075 = vld [vmem:[#allocation2 + $0x60] sm:$0xff]
          %v1076 = vld [vmem:[#allocation2 + $0x68] sm:$0xff]
          %v1077 = vld [vmem:[#allocation2 + $0x70] sm:$0xff]
          %v1078 = vld [vmem:[#allocation2 + $0x78] sm:$0xff]
          %v1079 = vld [vmem:[#allocation2 + $0x80] sm:$0xff]
          %v1080 = vld [vmem:[#allocation2 + $0x88] sm:$0xff]
          %v1081 = vld [vmem:[#allocation2 + $0x90] sm:$0xff]
          %v1082 = vld [vmem:[#allocation2 + $0x98] sm:$0xff]
          %v1083 = vld [vmem:[#allocation2 + $0xa0] sm:$0xff]
          %v1084 = vld [vmem:[#allocation2 + $0xa8] sm:$0xff]
          %v1085 = vld [vmem:[#allocation2 + $0xb0] sm:$0xff]
          %v1086 = vld [vmem:[#allocation2 + $0xb8] sm:$0xff]
          %v1087 = vld [vmem:[#allocation2 + $0xc0] sm:$0xff]
          %v1088 = vld [vmem:[#allocation2 + $0xc8] sm:$0xff]
          %v1089 = vld [vmem:[#allocation2 + $0xd0] sm:$0xff]
          %v1090 = vld [vmem:[#allocation2 + $0xd8] sm:$0xff]
          %v1091 = vld [vmem:[#allocation2 + $0xe0] sm:$0xff]
          %v1092 = vld [vmem:[#allocation2 + $0xe8] sm:$0xff]
          %v1093 = vld [vmem:[#allocation2 + $0xf0] sm:$0xff]
          %v1094 = vld [vmem:[#allocation2 + $0xf8] sm:$0xff]
          %v1095 = vmul.f32 %v1063, 0.00390625
          %v1096 = vmul.f32 %v1064, 0.00390625
          %v1097 = vmul.f32 %v1065, 0.00390625
          %v1098 = vmul.f32 %v1066, 0.00390625
          %v1099 = vmul.f32 %v1067, 0.00390625
          %v1100 = vmul.f32 %v1068, 0.00390625
          %v1101 = vmul.f32 %v1069, 0.00390625
          %v1102 = vmul.f32 %v1070, 0.00390625
          %v1103 = vmul.f32 %v1071, 0.00390625
          %v1104 = vmul.f32 %v1072, 0.00390625
          %v1105 = vmul.f32 %v1073, 0.00390625
          %v1106 = vmul.f32 %v1074, 0.00390625
          %v1107 = vmul.f32 %v1075, 0.00390625
          %v1108 = vmul.f32 %v1076, 0.00390625
          %v1109 = vmul.f32 %v1077, 0.00390625
          %v1110 = vmul.f32 %v1078, 0.00390625
          %v1111 = vmul.f32 %v1079, 0.00390625
          %v1112 = vmul.f32 %v1080, 0.00390625
          %v1113 = vmul.f32 %v1081, 0.00390625
          %v1114 = vmul.f32 %v1082, 0.00390625
          %v1115 = vmul.f32 %v1083, 0.00390625
          %v1116 = vmul.f32 %v1084, 0.00390625
          %v1117 = vmul.f32 %v1085, 0.00390625
          %v1118 = vmul.f32 %v1086, 0.00390625
          %v1119 = vmul.f32 %v1087, 0.00390625
          %v1120 = vmul.f32 %v1088, 0.00390625
          %v1121 = vmul.f32 %v1089, 0.00390625
          %v1122 = vmul.f32 %v1090, 0.00390625
          %v1123 = vmul.f32 %v1091, 0.00390625
          %v1124 = vmul.f32 %v1092, 0.00390625
          %v1125 = vmul.f32 %v1093, 0.00390625
          %v1126 = vmul.f32 %v1094, 0.00390625
          %v1127 = vld [vmem:[#allocation3] sm:$0xff]
          %v1128 = vld [vmem:[#allocation3 + $0x8] sm:$0xff]
          %v1129 = vld [vmem:[#allocation3 + $0x10] sm:$0xff]
          %v1130 = vld [vmem:[#allocation3 + $0x18] sm:$0xff]
          %v1131 = vld [vmem:[#allocation3 + $0x20] sm:$0xff]
          %v1132 = vld [vmem:[#allocation3 + $0x28] sm:$0xff]
          %v1133 = vld [vmem:[#allocation3 + $0x30] sm:$0xff]
          %v1134 = vld [vmem:[#allocation3 + $0x38] sm:$0xff]
          %v1135 = vld [vmem:[#allocation3 + $0x40] sm:$0xff]
          %v1136 = vld [vmem:[#allocation3 + $0x48] sm:$0xff]
          %v1137 = vld [vmem:[#allocation3 + $0x50] sm:$0xff]
          %v1138 = vld [vmem:[#allocation3 + $0x58] sm:$0xff]
          %v1139 = vld [vmem:[#allocation3 + $0x60] sm:$0xff]
          %v1140 = vld [vmem:[#allocation3 + $0x68] sm:$0xff]
          %v1141 = vld [vmem:[#allocation3 + $0x70] sm:$0xff]
          %v1142 = vld [vmem:[#allocation3 + $0x78] sm:$0xff]
          %v1143 = vld [vmem:[#allocation3 + $0x80] sm:$0xff]
          %v1144 = vld [vmem:[#allocation3 + $0x88] sm:$0xff]
          %v1145 = vld [vmem:[#allocation3 + $0x90] sm:$0xff]
          %v1146 = vld [vmem:[#allocation3 + $0x98] sm:$0xff]
          %v1147 = vld [vmem:[#allocation3 + $0xa0] sm:$0xff]
          %v1148 = vld [vmem:[#allocation3 + $0xa8] sm:$0xff]
          %v1149 = vld [vmem:[#allocation3 + $0xb0] sm:$0xff]
          %v1150 = vld [vmem:[#allocation3 + $0xb8] sm:$0xff]
          %v1151 = vld [vmem:[#allocation3 + $0xc0] sm:$0xff]
          %v1152 = vld [vmem:[#allocation3 + $0xc8] sm:$0xff]
          %v1153 = vld [vmem:[#allocation3 + $0xd0] sm:$0xff]
          %v1154 = vld [vmem:[#allocation3 + $0xd8] sm:$0xff]
          %v1155 = vld [vmem:[#allocation3 + $0xe0] sm:$0xff]
          %v1156 = vld [vmem:[#allocation3 + $0xe8] sm:$0xff]
          %v1157 = vld [vmem:[#allocation3 + $0xf0] sm:$0xff]
          %v1158 = vld [vmem:[#allocation3 + $0xf8] sm:$0xff]
          %v1159 = vmul.f32 %v1127, 0.00390625
          %v1160 = vmul.f32 %v1128, 0.00390625
          %v1161 = vmul.f32 %v1129, 0.00390625
          %v1162 = vmul.f32 %v1130, 0.00390625
          %v1163 = vmul.f32 %v1131, 0.00390625
          %v1164 = vmul.f32 %v1132, 0.00390625
          %v1165 = vmul.f32 %v1133, 0.00390625
          %v1166 = vmul.f32 %v1134, 0.00390625
          %v1167 = vmul.f32 %v1135, 0.00390625
          %v1168 = vmul.f32 %v1136, 0.00390625
          %v1169 = vmul.f32 %v1137, 0.00390625
          %v1170 = vmul.f32 %v1138, 0.00390625
          %v1171 = vmul.f32 %v1139, 0.00390625
          %v1172 = vmul.f32 %v1140, 0.00390625
          %v1173 = vmul.f32 %v1141, 0.00390625
          %v1174 = vmul.f32 %v1142, 0.00390625
          %v1175 = vmul.f32 %v1143, 0.00390625
          %v1176 = vmul.f32 %v1144, 0.00390625
          %v1177 = vmul.f32 %v1145, 0.00390625
          %v1178 = vmul.f32 %v1146, 0.00390625
          %v1179 = vmul.f32 %v1147, 0.00390625
          %v1180 = vmul.f32 %v1148, 0.00390625
          %v1181 = vmul.f32 %v1149, 0.00390625
          %v1182 = vmul.f32 %v1150, 0.00390625
          %v1183 = vmul.f32 %v1151, 0.00390625
          %v1184 = vmul.f32 %v1152, 0.00390625
          %v1185 = vmul.f32 %v1153, 0.00390625
          %v1186 = vmul.f32 %v1154, 0.00390625
          %v1187 = vmul.f32 %v1155, 0.00390625
          %v1188 = vmul.f32 %v1156, 0.00390625
          %v1189 = vmul.f32 %v1157, 0.00390625
          %v1190 = vmul.f32 %v1158, 0.00390625
          %v1191 = vmul.f32 %v1095, %v1095
          %v1192 = vmul.f32 %v1096, %v1096
          %v1193 = vmul.f32 %v1097, %v1097
          %v1194 = vmul.f32 %v1098, %v1098
          %v1195 = vmul.f32 %v1099, %v1099
          %v1196 = vmul.f32 %v1100, %v1100
          %v1197 = vmul.f32 %v1101, %v1101
          %v1198 = vmul.f32 %v1102, %v1102
          %v1199 = vmul.f32 %v1103, %v1103
          %v1200 = vmul.f32 %v1104, %v1104
          %v1201 = vmul.f32 %v1105, %v1105
          %v1202 = vmul.f32 %v1106, %v1106
          %v1203 = vmul.f32 %v1107, %v1107
          %v1204 = vmul.f32 %v1108, %v1108
          %v1205 = vmul.f32 %v1109, %v1109
          %v1206 = vmul.f32 %v1110, %v1110
          %v1207 = vmul.f32 %v1111, %v1111
          %v1208 = vmul.f32 %v1112, %v1112
          %v1209 = vmul.f32 %v1113, %v1113
          %v1210 = vmul.f32 %v1114, %v1114
          %v1211 = vmul.f32 %v1115, %v1115
          %v1212 = vmul.f32 %v1116, %v1116
          %v1213 = vmul.f32 %v1117, %v1117
          %v1214 = vmul.f32 %v1118, %v1118
          %v1215 = vmul.f32 %v1119, %v1119
          %v1216 = vmul.f32 %v1120, %v1120
          %v1217 = vmul.f32 %v1121, %v1121
          %v1218 = vmul.f32 %v1122, %v1122
          %v1219 = vmul.f32 %v1123, %v1123
          %v1220 = vmul.f32 %v1124, %v1124
          %v1221 = vmul.f32 %v1125, %v1125
          %v1222 = vmul.f32 %v1126, %v1126
          %v1223 = vsub.f32 %v1159, %v1191
          %v1224 = vsub.f32 %v1160, %v1192
          %v1225 = vsub.f32 %v1161, %v1193
          %v1226 = vsub.f32 %v1162, %v1194
          %v1227 = vsub.f32 %v1163, %v1195
          %v1228 = vsub.f32 %v1164, %v1196
          %v1229 = vsub.f32 %v1165, %v1197
          %v1230 = vsub.f32 %v1166, %v1198
          %v1231 = vsub.f32 %v1167, %v1199
          %v1232 = vsub.f32 %v1168, %v1200
          %v1233 = vsub.f32 %v1169, %v1201
          %v1234 = vsub.f32 %v1170, %v1202
          %v1235 = vsub.f32 %v1171, %v1203
          %v1236 = vsub.f32 %v1172, %v1204
          %v1237 = vsub.f32 %v1173, %v1205
          %v1238 = vsub.f32 %v1174, %v1206
          %v1239 = vsub.f32 %v1175, %v1207
          %v1240 = vsub.f32 %v1176, %v1208
          %v1241 = vsub.f32 %v1177, %v1209
          %v1242 = vsub.f32 %v1178, %v1210
          %v1243 = vsub.f32 %v1179, %v1211
          %v1244 = vsub.f32 %v1180, %v1212
          %v1245 = vsub.f32 %v1181, %v1213
          %v1246 = vsub.f32 %v1182, %v1214
          %v1247 = vsub.f32 %v1183, %v1215
          %v1248 = vsub.f32 %v1184, %v1216
          %v1249 = vsub.f32 %v1185, %v1217
          %v1250 = vsub.f32 %v1186, %v1218
          %v1251 = vsub.f32 %v1187, %v1219
          %v1252 = vsub.f32 %v1188, %v1220
          %v1253 = vsub.f32 %v1189, %v1221
          %v1254 = vsub.f32 %v1190, %v1222
          %v1255 = vmax.f32 %v1223, 0.0
          %v1256 = vmax.f32 %v1224, 0.0
          %v1257 = vmax.f32 %v1225, 0.0
          %v1258 = vmax.f32 %v1226, 0.0
          %v1259 = vmax.f32 %v1227, 0.0
          %v1260 = vmax.f32 %v1228, 0.0
          %v1261 = vmax.f32 %v1229, 0.0
          %v1262 = vmax.f32 %v1230, 0.0
          %v1263 = vmax.f32 %v1231, 0.0
          %v1264 = vmax.f32 %v1232, 0.0
          %v1265 = vmax.f32 %v1233, 0.0
          %v1266 = vmax.f32 %v1234, 0.0
          %v1267 = vmax.f32 %v1235, 0.0
          %v1268 = vmax.f32 %v1236, 0.0
          %v1269 = vmax.f32 %v1237, 0.0
          %v1270 = vmax.f32 %v1238, 0.0
          %v1271 = vmax.f32 %v1239, 0.0
          %v1272 = vmax.f32 %v1240, 0.0
          %v1273 = vmax.f32 %v1241, 0.0
          %v1274 = vmax.f32 %v1242, 0.0
          %v1275 = vmax.f32 %v1243, 0.0
          %v1276 = vmax.f32 %v1244, 0.0
          %v1277 = vmax.f32 %v1245, 0.0
          %v1278 = vmax.f32 %v1246, 0.0
          %v1279 = vmax.f32 %v1247, 0.0
          %v1280 = vmax.f32 %v1248, 0.0
          %v1281 = vmax.f32 %v1249, 0.0
          %v1282 = vmax.f32 %v1250, 0.0
          %v1283 = vmax.f32 %v1251, 0.0
          %v1284 = vmax.f32 %v1252, 0.0
          %v1285 = vmax.f32 %v1253, 0.0
          %v1286 = vmax.f32 %v1254, 0.0
          %v1287 = vadd.f32 %v1255, 1e-05
          %v1288 = vadd.f32 %v1256, 1e-05
          %v1289 = vadd.f32 %v1257, 1e-05
          %v1290 = vadd.f32 %v1258, 1e-05
          %v1291 = vadd.f32 %v1259, 1e-05
          %v1292 = vadd.f32 %v1260, 1e-05
          %v1293 = vadd.f32 %v1261, 1e-05
          %v1294 = vadd.f32 %v1262, 1e-05
          %v1295 = vadd.f32 %v1263, 1e-05
          %v1296 = vadd.f32 %v1264, 1e-05
          %v1297 = vadd.f32 %v1265, 1e-05
          %v1298 = vadd.f32 %v1266, 1e-05
          %v1299 = vadd.f32 %v1267, 1e-05
          %v1300 = vadd.f32 %v1268, 1e-05
          %v1301 = vadd.f32 %v1269, 1e-05
          %v1302 = vadd.f32 %v1270, 1e-05
          %v1303 = vadd.f32 %v1271, 1e-05
          %v1304 = vadd.f32 %v1272, 1e-05
          %v1305 = vadd.f32 %v1273, 1e-05
          %v1306 = vadd.f32 %v1274, 1e-05
          %v1307 = vadd.f32 %v1275, 1e-05
          %v1308 = vadd.f32 %v1276, 1e-05
          %v1309 = vadd.f32 %v1277, 1e-05
          %v1310 = vadd.f32 %v1278, 1e-05
          %v1311 = vadd.f32 %v1279, 1e-05
          %v1312 = vadd.f32 %v1280, 1e-05
          %v1313 = vadd.f32 %v1281, 1e-05
          %v1314 = vadd.f32 %v1282, 1e-05
          %v1315 = vadd.f32 %v1283, 1e-05
          %v1316 = vadd.f32 %v1284, 1e-05
          %v1317 = vadd.f32 %v1285, 1e-05
          %v1318 = vadd.f32 %v1286, 1e-05
          %v1319 = vrsqrt.pop %v1287
          %v1320 = vrsqrt.pop %v1288
          %v1321 = vrsqrt.pop %v1289
          %v1322 = vrsqrt.pop %v1290
          %v1323 = vrsqrt.pop %v1291
          %v1324 = vrsqrt.pop %v1292
          %v1325 = vrsqrt.pop %v1293
          %v1326 = vrsqrt.pop %v1294
          %v1327 = vrsqrt.pop %v1295
          %v1328 = vrsqrt.pop %v1296
          %v1329 = vrsqrt.pop %v1297
          %v1330 = vrsqrt.pop %v1298
          %v1331 = vrsqrt.pop %v1299
          %v1332 = vrsqrt.pop %v1300
          %v1333 = vrsqrt.pop %v1301
          %v1334 = vrsqrt.pop %v1302
          %v1335 = vrsqrt.pop %v1303
          %v1336 = vrsqrt.pop %v1304
          %v1337 = vrsqrt.pop %v1305
          %v1338 = vrsqrt.pop %v1306
          %v1339 = vrsqrt.pop %v1307
          %v1340 = vrsqrt.pop %v1308
          %v1341 = vrsqrt.pop %v1309
          %v1342 = vrsqrt.pop %v1310
          %v1343 = vrsqrt.pop %v1311
          %v1344 = vrsqrt.pop %v1312
          %v1345 = vrsqrt.pop %v1313
          %v1346 = vrsqrt.pop %v1314
          %v1347 = vrsqrt.pop %v1315
          %v1348 = vrsqrt.pop %v1316
          %v1349 = vrsqrt.pop %v1317
          %v1350 = vrsqrt.pop %v1318
          %1351 = vst.msk [vmem:[%s240] sm:$0xff] %vm802, %v1095
          %1352 = vst.msk [vmem:[%s240 + $0x8] sm:$0xff] %vm802, %v1096
          %1353 = vst.msk [vmem:[%s240 + $0x10] sm:$0xff] %vm802, %v1097
          %1354 = vst.msk [vmem:[%s240 + $0x18] sm:$0xff] %vm802, %v1098
          %1355 = vst.msk [vmem:[%s240 + $0x20] sm:$0xff] %vm802, %v1099
          %1356 = vst.msk [vmem:[%s240 + $0x28] sm:$0xff] %vm802, %v1100
          %1357 = vst.msk [vmem:[%s240 + $0x30] sm:$0xff] %vm802, %v1101
          %1358 = vst.msk [vmem:[%s240 + $0x38] sm:$0xff] %vm802, %v1102
          %1359 = vst.msk [vmem:[%s240 + $0x40] sm:$0xff] %vm802, %v1103
          %1360 = vst.msk [vmem:[%s240 + $0x48] sm:$0xff] %vm802, %v1104
          %1361 = vst.msk [vmem:[%s240 + $0x50] sm:$0xff] %vm802, %v1105
          %1362 = vst.msk [vmem:[%s240 + $0x58] sm:$0xff] %vm802, %v1106
          %1363 = vst.msk [vmem:[%s240 + $0x60] sm:$0xff] %vm802, %v1107
          %1364 = vst.msk [vmem:[%s240 + $0x68] sm:$0xff] %vm802, %v1108
          %1365 = vst.msk [vmem:[%s240 + $0x70] sm:$0xff] %vm802, %v1109
          %1366 = vst.msk [vmem:[%s240 + $0x78] sm:$0xff] %vm802, %v1110
          %1367 = vst.msk [vmem:[%s240 + $0x80] sm:$0xff] %vm802, %v1111
          %1368 = vst.msk [vmem:[%s240 + $0x88] sm:$0xff] %vm802, %v1112
          %1369 = vst.msk [vmem:[%s240 + $0x90] sm:$0xff] %vm802, %v1113
          %1370 = vst.msk [vmem:[%s240 + $0x98] sm:$0xff] %vm802, %v1114
          %1371 = vst.msk [vmem:[%s240 + $0xa0] sm:$0xff] %vm802, %v1115
          %1372 = vst.msk [vmem:[%s240 + $0xa8] sm:$0xff] %vm802, %v1116
          %1373 = vst.msk [vmem:[%s240 + $0xb0] sm:$0xff] %vm802, %v1117
          %1374 = vst.msk [vmem:[%s240 + $0xb8] sm:$0xff] %vm802, %v1118
          %1375 = vst.msk [vmem:[%s240 + $0xc0] sm:$0xff] %vm802, %v1119
          %1376 = vst.msk [vmem:[%s240 + $0xc8] sm:$0xff] %vm802, %v1120
          %1377 = vst.msk [vmem:[%s240 + $0xd0] sm:$0xff] %vm802, %v1121
          %1378 = vst.msk [vmem:[%s240 + $0xd8] sm:$0xff] %vm802, %v1122
          %1379 = vst.msk [vmem:[%s240 + $0xe0] sm:$0xff] %vm802, %v1123
          %1380 = vst.msk [vmem:[%s240 + $0xe8] sm:$0xff] %vm802, %v1124
          %1381 = vst.msk [vmem:[%s240 + $0xf0] sm:$0xff] %vm802, %v1125
          %1382 = vst.msk [vmem:[%s240 + $0xf8] sm:$0xff] %vm802, %v1126
          %1383 = vst.msk [vmem:[%s245] sm:$0xff] %vm802, %v1319
          %1384 = vst.msk [vmem:[%s245 + $0x8] sm:$0xff] %vm802, %v1320
          %1385 = vst.msk [vmem:[%s245 + $0x10] sm:$0xff] %vm802, %v1321
          %1386 = vst.msk [vmem:[%s245 + $0x18] sm:$0xff] %vm802, %v1322
          %1387 = vst.msk [vmem:[%s245 + $0x20] sm:$0xff] %vm802, %v1323
          %1388 = vst.msk [vmem:[%s245 + $0x28] sm:$0xff] %vm802, %v1324
          %1389 = vst.msk [vmem:[%s245 + $0x30] sm:$0xff] %vm802, %v1325
          %1390 = vst.msk [vmem:[%s245 + $0x38] sm:$0xff] %vm802, %v1326
          %1391 = vst.msk [vmem:[%s245 + $0x40] sm:$0xff] %vm802, %v1327
          %1392 = vst.msk [vmem:[%s245 + $0x48] sm:$0xff] %vm802, %v1328
          %1393 = vst.msk [vmem:[%s245 + $0x50] sm:$0xff] %vm802, %v1329
          %1394 = vst.msk [vmem:[%s245 + $0x58] sm:$0xff] %vm802, %v1330
          %1395 = vst.msk [vmem:[%s245 + $0x60] sm:$0xff] %vm802, %v1331
          %1396 = vst.msk [vmem:[%s245 + $0x68] sm:$0xff] %vm802, %v1332
          %1397 = vst.msk [vmem:[%s245 + $0x70] sm:$0xff] %vm802, %v1333
          %1398 = vst.msk [vmem:[%s245 + $0x78] sm:$0xff] %vm802, %v1334
          %1399 = vst.msk [vmem:[%s245 + $0x80] sm:$0xff] %vm802, %v1335
          %1400 = vst.msk [vmem:[%s245 + $0x88] sm:$0xff] %vm802, %v1336
          %1401 = vst.msk [vmem:[%s245 + $0x90] sm:$0xff] %vm802, %v1337
          %1402 = vst.msk [vmem:[%s245 + $0x98] sm:$0xff] %vm802, %v1338
          %1403 = vst.msk [vmem:[%s245 + $0xa0] sm:$0xff] %vm802, %v1339
          %1404 = vst.msk [vmem:[%s245 + $0xa8] sm:$0xff] %vm802, %v1340
          %1405 = vst.msk [vmem:[%s245 + $0xb0] sm:$0xff] %vm802, %v1341
          %1406 = vst.msk [vmem:[%s245 + $0xb8] sm:$0xff] %vm802, %v1342
          %1407 = vst.msk [vmem:[%s245 + $0xc0] sm:$0xff] %vm802, %v1343
          %1408 = vst.msk [vmem:[%s245 + $0xc8] sm:$0xff] %vm802, %v1344
          %1409 = vst.msk [vmem:[%s245 + $0xd0] sm:$0xff] %vm802, %v1345
          %1410 = vst.msk [vmem:[%s245 + $0xd8] sm:$0xff] %vm802, %v1346
          %1411 = vst.msk [vmem:[%s245 + $0xe0] sm:$0xff] %vm802, %v1347
          %1412 = vst.msk [vmem:[%s245 + $0xe8] sm:$0xff] %vm802, %v1348
          %1413 = vst.msk [vmem:[%s245 + $0xf0] sm:$0xff] %vm802, %v1349
          %1414 = vst.msk [vmem:[%s245 + $0xf8] sm:$0xff] %vm802, %v1350
        $region36: #{tpu_custom_call.1} parent=27 // pred_fallthru
          _
        %s1415 = sand.u32 %s90, 1
        %s1416 = scalar_lea.sflag [#allocation5], %s1415
        %s1417 = sand.u32 %s90, 1
        %s1418 = smul.addr %s1417, 256
        %s1419 = scalar_lea.vmem [#allocation4], %s1418
        %p1420 = scmp.lt.s32.totalorder %s23, 1
        %s1421 = scalar_select %p1420, %s23, 1
        %s1422 = smul.addr %s1421, 32
        %s1423 = smul.addr %s1422, 8
        %s1424 = scalar_lea.vmem %s3, %s1423
        %p1425 = scmp.lt.s32.totalorder %s23, 1
        %s1426 = scalar_select %p1425, %s23, 1
        %s1427 = smul.addr %s1426, 32
        %s1428 = smul.addr %s1427, 8
        %s1429 = scalar_lea.vmem %s4, %s1428
        // Predicated region
        $region37: #{tpu_custom_call.1} parent=27 // pred_check
          %p1430 = pneg %p100
        $region38: #{tpu_custom_call.1} parent=27 // pred_check_branch
          %1432 = sbr.rel (%p1430) target = $region40
        $region39: #{tpu_custom_call.1} parent=27 // pred_region
          %s1434 = ssub.s32 4096, 4096
          %1435 = vsyncadd %s1416, %s1434
          %s1436 = smul.addr %s23, 64
          %s1437 = sadd.s32 %s24, %s1436
          %s1438 = smul.addr %s1437, 128
          %s1439 = scalar_lea.hbm %s2, %s1438
          %s1440 = sshll.u32 %s1419, 4
          %s1441 = int_to_ptr.vmem [resolvable:$true] %s1440
          %1446 = dma.vmem_to_hbm [thread:$0]  %s1441, 4096, %s1439, %s1416, 128, 256, 8
        $region40: #{tpu_custom_call.1} parent=27 // pred_fallthru
          _
        // Predicated region
        $region41: #{tpu_custom_call.1} parent=27 // pred_check
          %p1447 = pneg %p126
        $region42: #{tpu_custom_call.1} parent=27 // pred_check_branch
          %1449 = sbr.rel (%p1447) target = $region44
        $region43: #{tpu_custom_call.1} parent=27 // pred_region
          _
        $region44: #{tpu_custom_call.1} parent=27 // pred_fallthru
          _
        // Predicated region
        $region45: #{tpu_custom_call.1} parent=27 // pred_check
          %p1450 = pneg %p152
        $region46: #{tpu_custom_call.1} parent=27 // pred_check_branch
          %1452 = sbr.rel (%p1450) target = $region48
        $region47: #{tpu_custom_call.1} parent=27 // pred_region
          _
        $region48: #{tpu_custom_call.1} parent=27 // pred_fallthru
          _
      $region28: #{tpu_custom_call.1} parent=5 // pred_fallthru
        _
      %p1453 = scmp.le.s32.totalorder 2, %s14
      // Predicated region
      $region49: #{tpu_custom_call.1} parent=5 // pred_check
        %p1454 = pneg %p1453
      $region50: #{tpu_custom_call.1} parent=5 // pred_check_branch
        %1456 = sbr.rel (%p1454) target = $region52
      $region51: #{tpu_custom_call.1} parent=5 // pred_region
        %s1457 = ssub.s32 %s14, 2
        // Predicated region
        $region53: #{tpu_custom_call.1} parent=51 // pred_check
          %p1458 = pneg %p106
        $region54: #{tpu_custom_call.1} parent=51 // pred_check_branch
          %1460 = sbr.rel (%p1458) target = $region56
        $region55: #{tpu_custom_call.1} parent=51 // pred_region
          %s1461 = sand.u32 %s91, 1
          %s1462 = scalar_lea.sflag [#allocation5], %s1461
          %s1463 = sand.u32 %s91, 1
          %s1464 = smul.addr %s1463, 256
          %s1465 = scalar_lea.vmem [#allocation4], %s1464
          %1466 = dma.done %s1462, 4096
        $region56: #{tpu_custom_call.1} parent=51 // pred_fallthru
          _
        // Predicated region
        $region57: #{tpu_custom_call.1} parent=51 // pred_check
          %p1467 = pneg %p132
        $region58: #{tpu_custom_call.1} parent=51 // pred_check_branch
          %1469 = sbr.rel (%p1467) target = $region60
        $region59: #{tpu_custom_call.1} parent=51 // pred_region
          %p1470 = scmp.lt.s32.totalorder %s25, 1
          %s1471 = scalar_select %p1470, %s25, 1
          %s1472 = smul.addr %s1471, 32
          %s1473 = smul.addr %s1472, 8
          %s1474 = scalar_lea.vmem %s3, %s1473
        $region60: #{tpu_custom_call.1} parent=51 // pred_fallthru
          _
        // Predicated region
        $region61: #{tpu_custom_call.1} parent=51 // pred_check
          %p1475 = pneg %p158
        $region62: #{tpu_custom_call.1} parent=51 // pred_check_branch
          %1477 = sbr.rel (%p1475) target = $region64
        $region63: #{tpu_custom_call.1} parent=51 // pred_region
          %p1478 = scmp.lt.s32.totalorder %s25, 1
          %s1479 = scalar_select %p1478, %s25, 1
          %s1480 = smul.addr %s1479, 32
          %s1481 = smul.addr %s1480, 8
          %s1482 = scalar_lea.vmem %s4, %s1481
        $region64: #{tpu_custom_call.1} parent=51 // pred_fallthru
          _
      $region52: #{tpu_custom_call.1} parent=5 // pred_fallthru
        _
    $region6: #{tpu_custom_call.1} parent=1 // loop_footer
      %s18 = sadd.s32 1, %s14
    $region7: #{tpu_custom_call.1} parent=1 // loop_footer_branch
      %13 = sbr.rel target = $region3
    $region8: #{tpu_custom_call.1} parent=1 // loop_exit
      _
    %1483 = vsyncpa [#allocation5], 1
    %s1484 = scalar_lea.sflag [#allocation5], 1
    %1485 = vsyncpa %s1484, 1

</llo_original>
